<compile_context>
chip_gen: v7x
topology: tpu7x:2x2x1
jax: 0.10.0
libtpu: 0.0.40
codegen_flags: <defaults>
</compile_context>

<pallas_src>
import functools

import jax
import jax.numpy as jnp
from jax import lax
from jax.experimental import pallas as pl
from jax.experimental.pallas import tpu as pltpu

LEAKY_SLOPE = 0.01        # F.leaky_relu default
LANE = 128                # TPU lane width; all feature dims are zero-padded to it
SRC_CHUNK = 128           # source-node chunk size for the running neighbor max
MAX_UNROLL_CHUNKS = 4     # above this, use lax.fori_loop instead of Python unroll


def _leaky_relu(x):
    return jnp.where(x > 0, x, LEAKY_SLOPE * x)


def _neighbor_max(p, mask3, has_neigh):
    """Max-pool aggregation: out[i] = max_{j: adj[i,j]>0} p[j], 0 if no neighbors.

    Chunked running max over source nodes so the (N, C, F) select intermediate
    stays bounded instead of materializing (N, N, F).  Runs in p.dtype
    (bf16 on v6e/v7x, f32 on v5e).
    """
    n, f = p.shape
    dtype = p.dtype
    fill = jnp.asarray(jnp.finfo(dtype).min, dtype)
    num_chunks = -(-n // SRC_CHUNK)

    if n <= SRC_CHUNK:
        masked = jnp.where(mask3, p[None, :, :], fill)
        mx = jnp.max(masked, axis=1)
    elif num_chunks <= MAX_UNROLL_CHUNKS:
        mx = jnp.full((n, f), fill, dtype)
        for j0 in range(0, n, SRC_CHUNK):
            j1 = min(j0 + SRC_CHUNK, n)
            masked = jnp.where(mask3[:, j0:j1, :], p[None, j0:j1, :], fill)
            mx = jnp.maximum(mx, jnp.max(masked, axis=1))
    else:
        # lax.fori_loop keeps code size / vreg live ranges bounded at large N.
        assert n % SRC_CHUNK == 0, "pad N to a multiple of SRC_CHUNK for the loop path"

        def body(c, mx):
            j0 = pl.multiple_of(c * SRC_CHUNK, SRC_CHUNK)
            p_c = lax.dynamic_slice(p, (j0, 0), (SRC_CHUNK, f))
            m_c = lax.dynamic_slice(mask3, (0, j0, 0), (n, SRC_CHUNK, 1))
            masked = jnp.where(m_c, p_c[None, :, :], fill)
            return jnp.maximum(mx, jnp.max(masked, axis=1))

        mx = lax.fori_loop(0, num_chunks, body, jnp.full((n, f), fill, dtype))

    return jnp.where(has_neigh, mx, jnp.zeros((), dtype))


def _gnn32_kernel(a_ref, x_ref, w_ref, b_ref, out_ref, *, layout, agg_dtype):
    a = a_ref[...]
    # Hoisted adjacency-derived quantities, shared by all three SAGE layers.
    mask3 = a[:, :, None] > 0.0                    # (N, N, 1)
    has_neigh = jnp.sum(a, axis=1, keepdims=True) > 0.0   # (N, 1)

    def W(entry):                                  # static, tile-aligned slab slice
        off, k = entry
        return w_ref[off:off + k, :]               # (k, 128) bf16

    def Bias(row):
        return b_ref[row:row + 1, :]               # (1, 128) f32

    h = x_ref[...]                                 # (N, 128) f32, zero-padded lanes

    for e_wp, e_bp, e_wsn, e_b in layout["sage"]:
        h_bf = h.astype(jnp.bfloat16)
        # fc_pool + ReLU: one bf16 MXU call, f32 accumulation.
        p = jnp.maximum(
            jnp.dot(h_bf, W(e_wp), preferred_element_type=jnp.float32) + Bias(e_bp),
            0.0)
        # Aggregation dtype: bf16 on v6e/v7x (bf16 VPU), f32 on v5e.
        neigh = _neighbor_max(p.astype(agg_dtype), mask3, has_neigh)
        # Fused fc_self + fc_neigh: single MXU call with K = 256.  Operands are
        # cast to bf16 BEFORE the concat -> no (N, 256) f32 temp is materialized.
        hn = jnp.concatenate([h_bf, neigh.astype(jnp.bfloat16)], axis=1)   # (N, 256) bf16
        h = _leaky_relu(
            jnp.dot(hn, W(e_wsn), preferred_element_type=jnp.float32) + Bias(e_b))

    # liner1 + leaky_relu
    h = _leaky_relu(
        jnp.dot(h.astype(jnp.bfloat16), W(layout["l1_w"]),
                preferred_element_type=jnp.float32) + Bias(layout["l1_b"]))
    # liner2 (output padded to 128 lanes -> lane-dense store) + sigmoid
    z = jnp.dot(h.astype(jnp.bfloat16), W(layout["l2_w"]),
                preferred_element_type=jnp.float32) + Bias(layout["l2_b"])
    # sigmoid = 1 / (1 + exp(-z)); reciprocal on the EUP slot.
    out_ref[...] = pl.reciprocal(1.0 + jnp.exp(-z), approx=True)


def _pad_block(mat, rows=LANE, cols=LANE):
    out = jnp.zeros((rows, cols), jnp.float32)
    return out.at[:mat.shape[0], :mat.shape[1]].set(mat)


def pack_params(params):
    """Pack all weights into one bf16 (K_total, 128) slab and all biases into one
    f32 (8, 128) slab. fc_self / fc_neigh are fused along the contraction axis.
    Returns (W_slab, B_slab, layout) where `layout` holds static row offsets used
    for in-kernel slicing.  Called ONCE at setup time, never in the hot path."""
    w_blocks, b_rows = [], []
    layout = {"sage": []}
    off = 0

    def add_w(block):
        nonlocal off
        w_blocks.append(block)
        entry = (off, block.shape[0])
        off += block.shape[0]
        return entry

    def add_b(vec):
        r = len(b_rows)
        b_rows.append(jnp.zeros((LANE,), jnp.float32).at[:vec.shape[0]].set(vec))
        return r

    for name in ("sage1", "sage2", "sage3"):
        s = params[name]
        fin = s["wp"].shape[1]
        fout = s["ws"].shape[0]
        assert fin <= LANE and fout <= LANE  # TODO(synk): tile feature dims > 128
        # Fused self/neigh weight: rows [0, LANE) consume h, rows [LANE, 2*LANE)
        # consume the aggregated neighbor features.
        wsn = jnp.zeros((2 * LANE, LANE), jnp.float32)
        wsn = wsn.at[:fin, :fout].set(s["ws"].T)
        wsn = wsn.at[LANE:LANE + fin, :fout].set(s["wn"].T)

        e_wp = add_w(_pad_block(s["wp"].T))
        e_bp = add_b(s["bp"])
        e_wsn = add_w(wsn)
        e_b = add_b(s["b"])
        layout["sage"].append((e_wp, e_bp, e_wsn, e_b))

    layout["l1_w"] = add_w(_pad_block(params["wl1"].T))
    layout["l1_b"] = add_b(params["bl1"])
    layout["l2_w"] = add_w(_pad_block(params["wl2"].T))
    layout["l2_b"] = add_b(params["bl2"])

    W = jnp.concatenate(w_blocks, axis=0).astype(jnp.bfloat16)
    nb = max(8, -(-len(b_rows) // 8) * 8)
    B = jnp.zeros((nb, LANE), jnp.float32).at[:len(b_rows)].set(jnp.stack(b_rows))
    return W, B, layout


def _default_agg_dtype():
    """bf16 neighbor-max only on chips with a bf16 VPU path (v6e / v7x)."""
    try:
        kind = jax.devices()[0].device_kind.lower()
    except Exception:
        return jnp.float32
    return jnp.bfloat16 if ("v6" in kind or "v7" in kind) else jnp.float32


def make_gnn32_forward(params, agg_dtype=None):
    """Pack parameters ONCE and return a jitted forward callable (adj, x) -> probs.

    The jitted function covers x-padding, the fused pallas_call, and the output
    slice, so steady-state execution is a single dispatch."""
    if agg_dtype is None:
        agg_dtype = _default_agg_dtype()

    W, B, layout = pack_params(params)
    W = jax.device_put(W)
    B = jax.device_put(B)
    num_classes = params["wl2"].shape[0]
    in_f = params["sage1"]["wp"].shape[1]
    assert in_f <= LANE  # TODO(synk): tile feature dims > 128 into 128-lane blocks

    kernel = functools.partial(_gnn32_kernel, layout=layout, agg_dtype=agg_dtype)
    vmem = pl.BlockSpec(memory_space=pltpu.MemorySpace.VMEM)

    @jax.jit
    def _forward(adj, x, W, B):
        n = x.shape[0]
        x_pad = jnp.zeros((n, LANE), jnp.float32).at[:, :x.shape[1]].set(x)
        out_padded = pl.pallas_call(
            kernel,
            out_shape=jax.ShapeDtypeStruct((n, LANE), jnp.float32),
            in_specs=[vmem, vmem, vmem, vmem],
            out_specs=vmem,
            compiler_params=pltpu.CompilerParams(
                # Explicit scoped-VMEM budget (v5e default is only 16 MiB).
                vmem_limit_bytes=32 * 1024 * 1024),
        )(adj, x_pad, W, B)
        return out_padded[:, :num_classes]

    return lambda adj, x: _forward(adj, x, W, B)


def init_params(key, in_feats, h1, h2, h3, h4, num_classes):
    """Deterministic parameter init (PyTorch Linear weight convention (out, in))."""
    ks = list(jax.random.split(key, 32))
    k = iter(ks)

    def lin(fan_out, fan_in, bias=True):
        w = jax.random.normal(next(k), (fan_out, fan_in), jnp.float32) * 0.2
        b = (jax.random.normal(next(k), (fan_out,), jnp.float32) * 0.1) if bias \
            else jnp.zeros((fan_out,), jnp.float32)
        return w, b

    def sage(fin, fout):
        wp, bp = lin(fin, fin)                 # fc_pool
        ws, _ = lin(fout, fin, bias=False)     # fc_self (no bias in DGL)
        wn, _ = lin(fout, fin, bias=False)     # fc_neigh (no bias in DGL)
        b = jax.random.normal(next(k), (fout,), jnp.float32) * 0.1  # shared bias
        return dict(wp=wp, bp=bp, ws=ws, wn=wn, b=b)

    p = {
        "sage1": sage(in_feats, h1),
        "sage2": sage(h1, h2),
        "sage3": sage(h2, h3),
    }
    p["wl1"], p["bl1"] = lin(h4, h3)
    p["wl2"], p["bl2"] = lin(num_classes, h4)
    return p


def gnn32_reference(adj, x, params):
    """Pure-JAX reference. Matmul inputs are cast to bf16 (f32 accumulation) to
    mirror the kernel's MXU precision; everything else is f32."""
    def mm(a, b):
        return jnp.dot(a.astype(jnp.bfloat16), b.astype(jnp.bfloat16),
                       preferred_element_type=jnp.float32)

    mask3 = adj[:, :, None] > 0.0
    has_neigh = jnp.sum(adj, axis=1, keepdims=True) > 0.0

    def sage(h, s):
        p = jax.nn.relu(mm(h, s["wp"].T) + s["bp"])
        masked = jnp.where(mask3, p[None, :, :], -jnp.inf)
        neigh = jnp.where(has_neigh, jnp.max(masked, axis=1), 0.0)
        return mm(h, s["ws"].T) + mm(neigh, s["wn"].T) + s["b"]

    h = x
    for name in ("sage1", "sage2", "sage3"):
        h = jax.nn.leaky_relu(sage(h, params[name]), LEAKY_SLOPE)
    h = jax.nn.leaky_relu(mm(h, params["wl1"].T) + params["bl1"], LEAKY_SLOPE)
    z = mm(h, params["wl2"].T) + params["bl2"]
    return jax.nn.sigmoid(z)


if __name__ == "__main__":
    # Small, deterministic problem: 16 nodes, in_feats=16, h1=h2=32, h3=16,
    # h4=32, num_classes=4.
    N, IN_F, H1, H2, H3, H4, NC = 16, 16, 32, 32, 16, 32, 4

    key = jax.random.PRNGKey(0)
    k_adj, k_x, k_p = jax.random.split(key, 3)

    adj = (jax.random.uniform(k_adj, (N, N)) < 0.3).astype(jnp.float32)
    x = jax.random.normal(k_x, (N, IN_F), jnp.float32)
    params = init_params(k_p, IN_F, H1, H2, H3, H4, NC)

    # Packing + jit compile happen once here; steady-state calls are one dispatch.
    forward = make_gnn32_forward(params)

    out = jax.block_until_ready(forward(adj, x))
    ref = jax.block_until_ready(gnn32_reference(adj, x, params))

    assert out.shape == (N, NC), out.shape
    max_err = float(jnp.max(jnp.abs(out - ref)))
    assert max_err < 5e-3, max_err
    print("KERNEL_OK")
</pallas_src>

<mosaic_0001>
module attributes {stable_mosaic.version = 11 : i64} {
  func.func @_gnn32_kernel(%arg0: memref<16x16xf32, #tpu.memory_space<vmem>>, %arg1: memref<16x128xf32, #tpu.memory_space<vmem>>, %arg2: memref<1408x128xbf16, #tpu.memory_space<vmem>>, %arg3: memref<8x128xf32, #tpu.memory_space<vmem>>, %arg4: memref<16x128xf32, #tpu.memory_space<vmem>>) attributes {dimension_semantics = [], scalar_prefetch = 0 : i64, scratch_operands = 0 : i64, tpu.core_type = #tpu.core_type<tc>} {
    %c0 = arith.constant 0 : index
    %c0_0 = arith.constant 0 : index
    %0 = vector.load %arg0[%c0, %c0_0] : memref<16x16xf32, #tpu.memory_space<vmem>>, vector<16x16xf32>
    %1 = vector.shape_cast %0 : vector<16x16xf32> to vector<16x16x1xf32>
    %cst = arith.constant 0.000000e+00 : f32
    %2 = vector.broadcast %cst : f32 to vector<16x16x1xf32>
    %3 = arith.cmpf ogt, %1, %2 : vector<16x16x1xf32>
    %cst_1 = arith.constant dense<0.000000e+00> : vector<16xf32>
    %4 = vector.multi_reduction <add>, %0, %cst_1 [1] : vector<16x16xf32> to vector<16xf32>
    %5 = vector.shape_cast %4 : vector<16xf32> to vector<16x1xf32>
    %cst_2 = arith.constant 0.000000e+00 : f32
    %6 = vector.broadcast %cst_2 : f32 to vector<16x1xf32>
    %7 = arith.cmpf ogt, %5, %6 : vector<16x1xf32>
    %c0_3 = arith.constant 0 : index
    %c0_4 = arith.constant 0 : index
    %8 = vector.load %arg1[%c0_3, %c0_4] : memref<16x128xf32, #tpu.memory_space<vmem>>, vector<16x128xf32>
    %9 = arith.truncf %8 : vector<16x128xf32> to vector<16x128xbf16>
    %c0_5 = arith.constant 0 : index
    %c0_6 = arith.constant 0 : index
    %10 = vector.load %arg2[%c0_5, %c0_6] : memref<1408x128xbf16, #tpu.memory_space<vmem>>, vector<128x128xbf16>
    %cst_7 = arith.constant dense<0.000000e+00> : vector<16x128xf32>
    %11 = tpu.matmul %9, %10, %cst_7 {dimension_numbers = #tpu.dot_dimension_numbers<[1], [0], [0], [1], [0, 0, 1, 1], [], []>} : vector<16x128xbf16>, vector<128x128xbf16>, vector<16x128xf32> -> vector<16x128xf32>
    %c0_8 = arith.constant 0 : index
    %c0_9 = arith.constant 0 : index
    %12 = vector.load %arg3[%c0_8, %c0_9] : memref<8x128xf32, #tpu.memory_space<vmem>>, vector<1x128xf32>
    %13 = vector.broadcast %12 : vector<1x128xf32> to vector<16x128xf32>
    %14 = arith.addf %11, %13 : vector<16x128xf32>
    %cst_10 = arith.constant 0.000000e+00 : f32
    %15 = vector.broadcast %cst_10 : f32 to vector<16x128xf32>
    %16 = arith.maximumf %14, %15 : vector<16x128xf32>
    %17 = vector.shape_cast %16 : vector<16x128xf32> to vector<1x16x128xf32>
    %cst_11 = arith.constant -3.40282347E+38 : f32
    %18 = vector.shape_cast %3 : vector<16x16x1xi1> to vector<16x16x1xi1>
    %19 = vector.broadcast %18 : vector<16x16x1xi1> to vector<16x16x128xi1>
    %20 = vector.shape_cast %17 : vector<1x16x128xf32> to vector<1x16x128xf32>
    %21 = vector.broadcast %20 : vector<1x16x128xf32> to vector<16x16x128xf32>
    %22 = vector.broadcast %cst_11 : f32 to vector<16x16x128xf32>
    %23 = arith.select %19, %21, %22 : vector<16x16x128xi1>, vector<16x16x128xf32>
    %cst_12 = arith.constant dense<0xFF800000> : vector<16x128xf32>
    %24 = vector.multi_reduction <maximumf>, %23, %cst_12 [1] : vector<16x16x128xf32> to vector<16x128xf32>
    %cst_13 = arith.constant 0.000000e+00 : f32
    %25 = vector.shape_cast %7 : vector<16x1xi1> to vector<16x1xi1>
    %26 = vector.broadcast %25 : vector<16x1xi1> to vector<16x128xi1>
    %27 = vector.broadcast %cst_13 : f32 to vector<16x128xf32>
    %28 = arith.select %26, %24, %27 : vector<16x128xi1>, vector<16x128xf32>
    %29 = arith.truncf %28 : vector<16x128xf32> to vector<16x128xbf16>
    %30 = tpu.concatenate %9, %29 in 1 : vector<16x128xbf16>, vector<16x128xbf16> -> vector<16x256xbf16>
    %c128 = arith.constant 128 : index
    %c0_14 = arith.constant 0 : index
    %31 = vector.load %arg2[%c128, %c0_14] : memref<1408x128xbf16, #tpu.memory_space<vmem>>, vector<256x128xbf16>
    %cst_15 = arith.constant dense<0.000000e+00> : vector<16x128xf32>
    %32 = tpu.matmul %30, %31, %cst_15 {dimension_numbers = #tpu.dot_dimension_numbers<[1], [0], [0], [1], [0, 0, 1, 1], [], []>} : vector<16x256xbf16>, vector<256x128xbf16>, vector<16x128xf32> -> vector<16x128xf32>
    %c1 = arith.constant 1 : index
    %c0_16 = arith.constant 0 : index
    %33 = vector.load %arg3[%c1, %c0_16] : memref<8x128xf32, #tpu.memory_space<vmem>>, vector<1x128xf32>
    %34 = vector.broadcast %33 : vector<1x128xf32> to vector<16x128xf32>
    %35 = arith.addf %32, %34 : vector<16x128xf32>
    %cst_17 = arith.constant 0.000000e+00 : f32
    %36 = vector.broadcast %cst_17 : f32 to vector<16x128xf32>
    %37 = arith.cmpf ogt, %35, %36 : vector<16x128xf32>
    %cst_18 = arith.constant 0.00999999977 : f32
    %38 = vector.broadcast %cst_18 : f32 to vector<16x128xf32>
    %39 = arith.mulf %38, %35 : vector<16x128xf32>
    %40 = arith.select %37, %35, %39 : vector<16x128xi1>, vector<16x128xf32>
    %41 = arith.truncf %40 : vector<16x128xf32> to vector<16x128xbf16>
    %c384 = arith.constant 384 : index
    %c0_19 = arith.constant 0 : index
    %42 = vector.load %arg2[%c384, %c0_19] : memref<1408x128xbf16, #tpu.memory_space<vmem>>, vector<128x128xbf16>
    %cst_20 = arith.constant dense<0.000000e+00> : vector<16x128xf32>
    %43 = tpu.matmul %41, %42, %cst_20 {dimension_numbers = #tpu.dot_dimension_numbers<[1], [0], [0], [1], [0, 0, 1, 1], [], []>} : vector<16x128xbf16>, vector<128x128xbf16>, vector<16x128xf32> -> vector<16x128xf32>
    %c2 = arith.constant 2 : index
    %c0_21 = arith.constant 0 : index
    %44 = vector.load %arg3[%c2, %c0_21] : memref<8x128xf32, #tpu.memory_space<vmem>>, vector<1x128xf32>
    %45 = vector.broadcast %44 : vector<1x128xf32> to vector<16x128xf32>
    %46 = arith.addf %43, %45 : vector<16x128xf32>
    %cst_22 = arith.constant 0.000000e+00 : f32
    %47 = vector.broadcast %cst_22 : f32 to vector<16x128xf32>
    %48 = arith.maximumf %46, %47 : vector<16x128xf32>
    %49 = vector.shape_cast %48 : vector<16x128xf32> to vector<1x16x128xf32>
    %cst_23 = arith.constant -3.40282347E+38 : f32
    %50 = vector.shape_cast %3 : vector<16x16x1xi1> to vector<16x16x1xi1>
    %51 = vector.broadcast %50 : vector<16x16x1xi1> to vector<16x16x128xi1>
    %52 = vector.shape_cast %49 : vector<1x16x128xf32> to vector<1x16x128xf32>
    %53 = vector.broadcast %52 : vector<1x16x128xf32> to vector<16x16x128xf32>
    %54 = vector.broadcast %cst_23 : f32 to vector<16x16x128xf32>
    %55 = arith.select %51, %53, %54 : vector<16x16x128xi1>, vector<16x16x128xf32>
    %cst_24 = arith.constant dense<0xFF800000> : vector<16x128xf32>
    %56 = vector.multi_reduction <maximumf>, %55, %cst_24 [1] : vector<16x16x128xf32> to vector<16x128xf32>
    %cst_25 = arith.constant 0.000000e+00 : f32
    %57 = vector.shape_cast %7 : vector<16x1xi1> to vector<16x1xi1>
    %58 = vector.broadcast %57 : vector<16x1xi1> to vector<16x128xi1>
    %59 = vector.broadcast %cst_25 : f32 to vector<16x128xf32>
    %60 = arith.select %58, %56, %59 : vector<16x128xi1>, vector<16x128xf32>
    %61 = arith.truncf %60 : vector<16x128xf32> to vector<16x128xbf16>
    %62 = tpu.concatenate %41, %61 in 1 : vector<16x128xbf16>, vector<16x128xbf16> -> vector<16x256xbf16>
    %c512 = arith.constant 512 : index
    %c0_26 = arith.constant 0 : index
    %63 = vector.load %arg2[%c512, %c0_26] : memref<1408x128xbf16, #tpu.memory_space<vmem>>, vector<256x128xbf16>
    %cst_27 = arith.constant dense<0.000000e+00> : vector<16x128xf32>
    %64 = tpu.matmul %62, %63, %cst_27 {dimension_numbers = #tpu.dot_dimension_numbers<[1], [0], [0], [1], [0, 0, 1, 1], [], []>} : vector<16x256xbf16>, vector<256x128xbf16>, vector<16x128xf32> -> vector<16x128xf32>
    %c3 = arith.constant 3 : index
    %c0_28 = arith.constant 0 : index
    %65 = vector.load %arg3[%c3, %c0_28] : memref<8x128xf32, #tpu.memory_space<vmem>>, vector<1x128xf32>
    %66 = vector.broadcast %65 : vector<1x128xf32> to vector<16x128xf32>
    %67 = arith.addf %64, %66 : vector<16x128xf32>
    %cst_29 = arith.constant 0.000000e+00 : f32
    %68 = vector.broadcast %cst_29 : f32 to vector<16x128xf32>
    %69 = arith.cmpf ogt, %67, %68 : vector<16x128xf32>
    %cst_30 = arith.constant 0.00999999977 : f32
    %70 = vector.broadcast %cst_30 : f32 to vector<16x128xf32>
    %71 = arith.mulf %70, %67 : vector<16x128xf32>
    %72 = arith.select %69, %67, %71 : vector<16x128xi1>, vector<16x128xf32>
    %73 = arith.truncf %72 : vector<16x128xf32> to vector<16x128xbf16>
    %c768 = arith.constant 768 : index
    %c0_31 = arith.constant 0 : index
    %74 = vector.load %arg2[%c768, %c0_31] : memref<1408x128xbf16, #tpu.memory_space<vmem>>, vector<128x128xbf16>
    %cst_32 = arith.constant dense<0.000000e+00> : vector<16x128xf32>
    %75 = tpu.matmul %73, %74, %cst_32 {dimension_numbers = #tpu.dot_dimension_numbers<[1], [0], [0], [1], [0, 0, 1, 1], [], []>} : vector<16x128xbf16>, vector<128x128xbf16>, vector<16x128xf32> -> vector<16x128xf32>
    %c4 = arith.constant 4 : index
    %c0_33 = arith.constant 0 : index
    %76 = vector.load %arg3[%c4, %c0_33] : memref<8x128xf32, #tpu.memory_space<vmem>>, vector<1x128xf32>
    %77 = vector.broadcast %76 : vector<1x128xf32> to vector<16x128xf32>
    %78 = arith.addf %75, %77 : vector<16x128xf32>
    %cst_34 = arith.constant 0.000000e+00 : f32
    %79 = vector.broadcast %cst_34 : f32 to vector<16x128xf32>
    %80 = arith.maximumf %78, %79 : vector<16x128xf32>
    %81 = vector.shape_cast %80 : vector<16x128xf32> to vector<1x16x128xf32>
    %cst_35 = arith.constant -3.40282347E+38 : f32
    %82 = vector.shape_cast %3 : vector<16x16x1xi1> to vector<16x16x1xi1>
    %83 = vector.broadcast %82 : vector<16x16x1xi1> to vector<16x16x128xi1>
    %84 = vector.shape_cast %81 : vector<1x16x128xf32> to vector<1x16x128xf32>
    %85 = vector.broadcast %84 : vector<1x16x128xf32> to vector<16x16x128xf32>
    %86 = vector.broadcast %cst_35 : f32 to vector<16x16x128xf32>
    %87 = arith.select %83, %85, %86 : vector<16x16x128xi1>, vector<16x16x128xf32>
    %cst_36 = arith.constant dense<0xFF800000> : vector<16x128xf32>
    %88 = vector.multi_reduction <maximumf>, %87, %cst_36 [1] : vector<16x16x128xf32> to vector<16x128xf32>
    %cst_37 = arith.constant 0.000000e+00 : f32
    %89 = vector.shape_cast %7 : vector<16x1xi1> to vector<16x1xi1>
    %90 = vector.broadcast %89 : vector<16x1xi1> to vector<16x128xi1>
    %91 = vector.broadcast %cst_37 : f32 to vector<16x128xf32>
    %92 = arith.select %90, %88, %91 : vector<16x128xi1>, vector<16x128xf32>
    %93 = arith.truncf %92 : vector<16x128xf32> to vector<16x128xbf16>
    %94 = tpu.concatenate %73, %93 in 1 : vector<16x128xbf16>, vector<16x128xbf16> -> vector<16x256xbf16>
    %c896 = arith.constant 896 : index
    %c0_38 = arith.constant 0 : index
    %95 = vector.load %arg2[%c896, %c0_38] : memref<1408x128xbf16, #tpu.memory_space<vmem>>, vector<256x128xbf16>
    %cst_39 = arith.constant dense<0.000000e+00> : vector<16x128xf32>
    %96 = tpu.matmul %94, %95, %cst_39 {dimension_numbers = #tpu.dot_dimension_numbers<[1], [0], [0], [1], [0, 0, 1, 1], [], []>} : vector<16x256xbf16>, vector<256x128xbf16>, vector<16x128xf32> -> vector<16x128xf32>
    %c5 = arith.constant 5 : index
    %c0_40 = arith.constant 0 : index
    %97 = vector.load %arg3[%c5, %c0_40] : memref<8x128xf32, #tpu.memory_space<vmem>>, vector<1x128xf32>
    %98 = vector.broadcast %97 : vector<1x128xf32> to vector<16x128xf32>
    %99 = arith.addf %96, %98 : vector<16x128xf32>
    %cst_41 = arith.constant 0.000000e+00 : f32
    %100 = vector.broadcast %cst_41 : f32 to vector<16x128xf32>
    %101 = arith.cmpf ogt, %99, %100 : vector<16x128xf32>
    %cst_42 = arith.constant 0.00999999977 : f32
    %102 = vector.broadcast %cst_42 : f32 to vector<16x128xf32>
    %103 = arith.mulf %102, %99 : vector<16x128xf32>
    %104 = arith.select %101, %99, %103 : vector<16x128xi1>, vector<16x128xf32>
    %105 = arith.truncf %104 : vector<16x128xf32> to vector<16x128xbf16>
    %c1152 = arith.constant 1152 : index
    %c0_43 = arith.constant 0 : index
    %106 = vector.load %arg2[%c1152, %c0_43] : memref<1408x128xbf16, #tpu.memory_space<vmem>>, vector<128x128xbf16>
    %cst_44 = arith.constant dense<0.000000e+00> : vector<16x128xf32>
    %107 = tpu.matmul %105, %106, %cst_44 {dimension_numbers = #tpu.dot_dimension_numbers<[1], [0], [0], [1], [0, 0, 1, 1], [], []>} : vector<16x128xbf16>, vector<128x128xbf16>, vector<16x128xf32> -> vector<16x128xf32>
    %c6 = arith.constant 6 : index
    %c0_45 = arith.constant 0 : index
    %108 = vector.load %arg3[%c6, %c0_45] : memref<8x128xf32, #tpu.memory_space<vmem>>, vector<1x128xf32>
    %109 = vector.broadcast %108 : vector<1x128xf32> to vector<16x128xf32>
    %110 = arith.addf %107, %109 : vector<16x128xf32>
    %cst_46 = arith.constant 0.000000e+00 : f32
    %111 = vector.broadcast %cst_46 : f32 to vector<16x128xf32>
    %112 = arith.cmpf ogt, %110, %111 : vector<16x128xf32>
    %cst_47 = arith.constant 0.00999999977 : f32
    %113 = vector.broadcast %cst_47 : f32 to vector<16x128xf32>
    %114 = arith.mulf %113, %110 : vector<16x128xf32>
    %115 = arith.select %112, %110, %114 : vector<16x128xi1>, vector<16x128xf32>
    %116 = arith.truncf %115 : vector<16x128xf32> to vector<16x128xbf16>
    %c1280 = arith.constant 1280 : index
    %c0_48 = arith.constant 0 : index
    %117 = vector.load %arg2[%c1280, %c0_48] : memref<1408x128xbf16, #tpu.memory_space<vmem>>, vector<128x128xbf16>
    %cst_49 = arith.constant dense<0.000000e+00> : vector<16x128xf32>
    %118 = tpu.matmul %116, %117, %cst_49 {dimension_numbers = #tpu.dot_dimension_numbers<[1], [0], [0], [1], [0, 0, 1, 1], [], []>} : vector<16x128xbf16>, vector<128x128xbf16>, vector<16x128xf32> -> vector<16x128xf32>
    %c7 = arith.constant 7 : index
    %c0_50 = arith.constant 0 : index
    %119 = vector.load %arg3[%c7, %c0_50] : memref<8x128xf32, #tpu.memory_space<vmem>>, vector<1x128xf32>
    %120 = vector.broadcast %119 : vector<1x128xf32> to vector<16x128xf32>
    %121 = arith.addf %118, %120 : vector<16x128xf32>
    %cst_51 = arith.constant 0.000000e+00 : f32
    %122 = vector.broadcast %cst_51 : f32 to vector<16x128xf32>
    %123 = arith.subf %122, %121 : vector<16x128xf32>
    %124 = math.exp %123 : vector<16x128xf32>
    %cst_52 = arith.constant 1.000000e+00 : f32
    %125 = vector.broadcast %cst_52 : f32 to vector<16x128xf32>
    %126 = arith.addf %125, %124 : vector<16x128xf32>
    %127 = tpu.reciprocal %126 {approx = true} : vector<16x128xf32> -> vector<16x128xf32>
    %c0_53 = arith.constant 0 : index
    %c0_54 = arith.constant 0 : index
    %128 = vector.load %arg4[%c0_53, %c0_54] : memref<16x128xf32, #tpu.memory_space<vmem>>, vector<16x128xf32>
    tpu.vector_store %arg4[%c0_53, %c0_54], %127 {strides = array<i32>} : memref<16x128xf32, #tpu.memory_space<vmem>>, vector<16x128xf32>,
    return
  }
}

</mosaic_0001>

<llo_original>
// kernel: _forward.1
$region0: #{_forward.1}
  #allocation0 [shape = 'u32[]', space=smem, size = 0x4, offset = 0x4, fixed_abs, tag = 'smem constant byte address 0x4 - core index']
  #allocation1 [shape = 'u32[144,128]{1,0:T(1,128)}', space=vmem, size = 0x12000, scoped, tag = 'internal scratch']
  %s0 = inlined_call_operand.vmem [shape: f32[16,16], index: 0, kind: input, shape index: {}]
  %s1 = inlined_call_operand.vmem [shape: f32[16,128], index: 1, kind: input, shape index: {}]
  %s2 = inlined_call_operand.hbm [shape: bf16[1408,128], index: 2, kind: input, shape index: {}]
  %s3 = inlined_call_operand.vmem [shape: f32[8,128], index: 3, kind: input, shape index: {}]
  %s4 = inlined_call_operand.vmem [shape: f32[16,128], index: 4, kind: output, shape index: {}]
  %s5 = sld [smem:[#allocation0]]
  $region30: #{_forward.1} parent=0
    _
  %s7 = ssub.s32 1, %s5
  %s8 = scalar_select 0, %s7, %s5
  $region1: #{_forward.1} parent=0
    #allocation2 [shape = 'u8[360448]{0}', space=vmem, size = 0x58000, scoped, tag = 'input window, operand 2, single buffered']
    #allocation3 [shape = 's32[1]{0}', space=sflag, size = 0x4, scoped, tag = 'scoped memory for _forward.1']
    %9 = vsyncpa [#allocation3], 0
    // Predicated region
    $region2: #{_forward.1} parent=1 // pred_check
      _
    $region3: #{_forward.1} parent=1 // pred_check_branch
      %11 = sbr.rel (0) target = $region5
    $region4: #{_forward.1} parent=1 // pred_region
      _
    $region5: #{_forward.1} parent=1 // pred_fallthru
      _
    // Predicated region
    $region6: #{_forward.1} parent=1 // pred_check
      _
    $region7: #{_forward.1} parent=1 // pred_check_branch
      %13 = sbr.rel (0) target = $region9
    $region8: #{_forward.1} parent=1 // pred_region
      _
    $region9: #{_forward.1} parent=1 // pred_fallthru
      _
    // Predicated region
    $region10: #{_forward.1} parent=1 // pred_check
      _
    $region11: #{_forward.1} parent=1 // pred_check_branch
      %15 = sbr.rel (0) target = $region13
    $region12: #{_forward.1} parent=1 // pred_region
      %s17 = ssub.s32 11264, 11264
      %18 = vsyncadd [#allocation3], %s17
      %s19 = sshll.u32 [#allocation2], 4
      %s20 = int_to_ptr.vmem [resolvable:$true] %s19
      %25 = dma.hbm_to_vmem [thread:$0]  %s2, 11264, %s20, [#allocation3], 64, 64, 4
    $region13: #{_forward.1} parent=1 // pred_fallthru
      _
    // Predicated region
    $region14: #{_forward.1} parent=1 // pred_check
      _
    $region15: #{_forward.1} parent=1 // pred_check_branch
      %27 = sbr.rel (0) target = $region17
    $region16: #{_forward.1} parent=1 // pred_region
      _
    $region17: #{_forward.1} parent=1 // pred_fallthru
      _
    // Predicated region
    $region18: #{_forward.1} parent=1 // pred_check
      _
    $region19: #{_forward.1} parent=1 // pred_check_branch
      %29 = sbr.rel (0) target = $region21
    $region20: #{_forward.1} parent=1 // pred_region
      %30 = dma.done [#allocation3], 11264
    $region21: #{_forward.1} parent=1 // pred_fallthru
      _
    %v32 = vld [vmem:[%s0] sm:$0xff]
    %v33 = vld [vmem:[%s0 + $0x8] sm:$0xff]
    %v34 = vlaneseq
    %v35 = vshrl.u32 %v34, 7
    %v36 = vsub.s32 0, %v35
    %v37 = vrot.slane %v32, %v36
    %39 = vbcast.lane.b32.xlu0 %v37, 256
    %v40 = vpop.permute.xlu0 %39
    %s42 = sor.u32 256, 8
    %43 = vbcast.lane.b32.xlu0 %v37, %s42
    %v44 = vpop.permute.xlu0 %43
    %v45 = vlaneseq
    %v46 = vshrl.u32 %v45, 7
    %v47 = vsub.s32 1, %v46
    %v48 = vrot.slane %v32, %v47
    %50 = vbcast.lane.b32.xlu0 %v48, 256
    %v51 = vpop.permute.xlu0 %50
    %s53 = sor.u32 256, 8
    %54 = vbcast.lane.b32.xlu0 %v48, %s53
    %v55 = vpop.permute.xlu0 %54
    %v56 = vlaneseq
    %v57 = vshrl.u32 %v56, 7
    %v58 = vsub.s32 2, %v57
    %v59 = vrot.slane %v32, %v58
    %61 = vbcast.lane.b32.xlu0 %v59, 256
    %v62 = vpop.permute.xlu0 %61
    %s64 = sor.u32 256, 8
    %65 = vbcast.lane.b32.xlu0 %v59, %s64
    %v66 = vpop.permute.xlu0 %65
    %v67 = vlaneseq
    %v68 = vshrl.u32 %v67, 7
    %v69 = vsub.s32 3, %v68
    %v70 = vrot.slane %v32, %v69
    %72 = vbcast.lane.b32.xlu0 %v70, 256
    %v73 = vpop.permute.xlu0 %72
    %s75 = sor.u32 256, 8
    %76 = vbcast.lane.b32.xlu0 %v70, %s75
    %v77 = vpop.permute.xlu0 %76
    %v78 = vlaneseq
    %v79 = vshrl.u32 %v78, 7
    %v80 = vsub.s32 4, %v79
    %v81 = vrot.slane %v32, %v80
    %83 = vbcast.lane.b32.xlu0 %v81, 256
    %v84 = vpop.permute.xlu0 %83
    %s86 = sor.u32 256, 8
    %87 = vbcast.lane.b32.xlu0 %v81, %s86
    %v88 = vpop.permute.xlu0 %87
    %v89 = vlaneseq
    %v90 = vshrl.u32 %v89, 7
    %v91 = vsub.s32 5, %v90
    %v92 = vrot.slane %v32, %v91
    %94 = vbcast.lane.b32.xlu0 %v92, 256
    %v95 = vpop.permute.xlu0 %94
    %s97 = sor.u32 256, 8
    %98 = vbcast.lane.b32.xlu0 %v92, %s97
    %v99 = vpop.permute.xlu0 %98
    %v100 = vlaneseq
    %v101 = vshrl.u32 %v100, 7
    %v102 = vsub.s32 6, %v101
    %v103 = vrot.slane %v32, %v102
    %105 = vbcast.lane.b32.xlu0 %v103, 256
    %v106 = vpop.permute.xlu0 %105
    %s108 = sor.u32 256, 8
    %109 = vbcast.lane.b32.xlu0 %v103, %s108
    %v110 = vpop.permute.xlu0 %109
    %v111 = vlaneseq
    %v112 = vshrl.u32 %v111, 7
    %v113 = vsub.s32 7, %v112
    %v114 = vrot.slane %v32, %v113
    %116 = vbcast.lane.b32.xlu0 %v114, 256
    %v117 = vpop.permute.xlu0 %116
    %s119 = sor.u32 256, 8
    %120 = vbcast.lane.b32.xlu0 %v114, %s119
    %v121 = vpop.permute.xlu0 %120
    %v122 = vlaneseq
    %v123 = vshrl.u32 %v122, 7
    %v124 = vsub.s32 0, %v123
    %v125 = vrot.slane %v33, %v124
    %127 = vbcast.lane.b32.xlu0 %v125, 256
    %v128 = vpop.permute.xlu0 %127
    %s130 = sor.u32 256, 8
    %131 = vbcast.lane.b32.xlu0 %v125, %s130
    %v132 = vpop.permute.xlu0 %131
    %v133 = vlaneseq
    %v134 = vshrl.u32 %v133, 7
    %v135 = vsub.s32 1, %v134
    %v136 = vrot.slane %v33, %v135
    %138 = vbcast.lane.b32.xlu0 %v136, 256
    %v139 = vpop.permute.xlu0 %138
    %s141 = sor.u32 256, 8
    %142 = vbcast.lane.b32.xlu0 %v136, %s141
    %v143 = vpop.permute.xlu0 %142
    %v144 = vlaneseq
    %v145 = vshrl.u32 %v144, 7
    %v146 = vsub.s32 2, %v145
    %v147 = vrot.slane %v33, %v146
    %149 = vbcast.lane.b32.xlu0 %v147, 256
    %v150 = vpop.permute.xlu0 %149
    %s152 = sor.u32 256, 8
    %153 = vbcast.lane.b32.xlu0 %v147, %s152
    %v154 = vpop.permute.xlu0 %153
    %v155 = vlaneseq
    %v156 = vshrl.u32 %v155, 7
    %v157 = vsub.s32 3, %v156
    %v158 = vrot.slane %v33, %v157
    %160 = vbcast.lane.b32.xlu0 %v158, 256
    %v161 = vpop.permute.xlu0 %160
    %s163 = sor.u32 256, 8
    %164 = vbcast.lane.b32.xlu0 %v158, %s163
    %v165 = vpop.permute.xlu0 %164
    %v166 = vlaneseq
    %v167 = vshrl.u32 %v166, 7
    %v168 = vsub.s32 4, %v167
    %v169 = vrot.slane %v33, %v168
    %171 = vbcast.lane.b32.xlu0 %v169, 256
    %v172 = vpop.permute.xlu0 %171
    %s174 = sor.u32 256, 8
    %175 = vbcast.lane.b32.xlu0 %v169, %s174
    %v176 = vpop.permute.xlu0 %175
    %v177 = vlaneseq
    %v178 = vshrl.u32 %v177, 7
    %v179 = vsub.s32 5, %v178
    %v180 = vrot.slane %v33, %v179
    %182 = vbcast.lane.b32.xlu0 %v180, 256
    %v183 = vpop.permute.xlu0 %182
    %s185 = sor.u32 256, 8
    %186 = vbcast.lane.b32.xlu0 %v180, %s185
    %v187 = vpop.permute.xlu0 %186
    %v188 = vlaneseq
    %v189 = vshrl.u32 %v188, 7
    %v190 = vsub.s32 6, %v189
    %v191 = vrot.slane %v33, %v190
    %193 = vbcast.lane.b32.xlu0 %v191, 256
    %v194 = vpop.permute.xlu0 %193
    %s196 = sor.u32 256, 8
    %197 = vbcast.lane.b32.xlu0 %v191, %s196
    %v198 = vpop.permute.xlu0 %197
    %v199 = vlaneseq
    %v200 = vshrl.u32 %v199, 7
    %v201 = vsub.s32 7, %v200
    %v202 = vrot.slane %v33, %v201
    %204 = vbcast.lane.b32.xlu0 %v202, 256
    %v205 = vpop.permute.xlu0 %204
    %s207 = sor.u32 256, 8
    %208 = vbcast.lane.b32.xlu0 %v202, %s207
    %v209 = vpop.permute.xlu0 %208
    %vm210 = vcmp.gt.f32.partialorder %v40, 0.0
    %vm211 = vcmp.gt.f32.partialorder %v44, 0.0
    %vm212 = vcmp.gt.f32.partialorder %v51, 0.0
    %vm213 = vcmp.gt.f32.partialorder %v55, 0.0
    %vm214 = vcmp.gt.f32.partialorder %v62, 0.0
    %vm215 = vcmp.gt.f32.partialorder %v66, 0.0
    %vm216 = vcmp.gt.f32.partialorder %v73, 0.0
    %vm217 = vcmp.gt.f32.partialorder %v77, 0.0
    %vm218 = vcmp.gt.f32.partialorder %v84, 0.0
    %vm219 = vcmp.gt.f32.partialorder %v88, 0.0
    %vm220 = vcmp.gt.f32.partialorder %v95, 0.0
    %vm221 = vcmp.gt.f32.partialorder %v99, 0.0
    %vm222 = vcmp.gt.f32.partialorder %v106, 0.0
    %vm223 = vcmp.gt.f32.partialorder %v110, 0.0
    %vm224 = vcmp.gt.f32.partialorder %v117, 0.0
    %vm225 = vcmp.gt.f32.partialorder %v121, 0.0
    %vm226 = vcmp.gt.f32.partialorder %v128, 0.0
    %vm227 = vcmp.gt.f32.partialorder %v132, 0.0
    %vm228 = vcmp.gt.f32.partialorder %v139, 0.0
    %vm229 = vcmp.gt.f32.partialorder %v143, 0.0
    %vm230 = vcmp.gt.f32.partialorder %v150, 0.0
    %vm231 = vcmp.gt.f32.partialorder %v154, 0.0
    %vm232 = vcmp.gt.f32.partialorder %v161, 0.0
    %vm233 = vcmp.gt.f32.partialorder %v165, 0.0
    %vm234 = vcmp.gt.f32.partialorder %v172, 0.0
    %vm235 = vcmp.gt.f32.partialorder %v176, 0.0
    %vm236 = vcmp.gt.f32.partialorder %v183, 0.0
    %vm237 = vcmp.gt.f32.partialorder %v187, 0.0
    %vm238 = vcmp.gt.f32.partialorder %v194, 0.0
    %vm239 = vcmp.gt.f32.partialorder %v198, 0.0
    %vm240 = vcmp.gt.f32.partialorder %v205, 0.0
    %vm241 = vcmp.gt.f32.partialorder %v209, 0.0
    %vm242 = vcmask 130048
    %v243 = vsel %vm242, %v32, 0.0
    %244 = vadd.xlane.f32.xlu0 %v243
    %v245 = vpop.xlane.xlu0 %244
    %v246 = vsel %vm242, %v33, 0.0
    %247 = vadd.xlane.f32.xlu0 %v246
    %v248 = vpop.xlane.xlu0 %247
    %vm249 = vcmp.gt.f32.partialorder %v245, 0.0
    %vm250 = vcmp.gt.f32.partialorder %v248, 0.0
    %v251 = vld [vmem:[%s1] sm:$0xff]
    %v252 = vld [vmem:[%s1 + $0x8] sm:$0xff]
    %v253 = vpack.c.bf16 %v252, %v251
    %v254 = vld [vmem:[#allocation2] sm:$0xf]
    %v255 = vld [vmem:[#allocation2 + $0x4] sm:$0xf]
    %v256 = vld [vmem:[#allocation2 + $0x8] sm:$0xf]
    %v257 = vld [vmem:[#allocation2 + $0xc] sm:$0xf]
    %v258 = vld [vmem:[#allocation2 + $0x10] sm:$0xf]
    %v259 = vld [vmem:[#allocation2 + $0x14] sm:$0xf]
    %v260 = vld [vmem:[#allocation2 + $0x18] sm:$0xf]
    %v261 = vld [vmem:[#allocation2 + $0x1c] sm:$0xf]
    %v262 = vld [vmem:[#allocation2 + $0x20] sm:$0xf]
    %v263 = vld [vmem:[#allocation2 + $0x24] sm:$0xf]
    %v264 = vld [vmem:[#allocation2 + $0x28] sm:$0xf]
    %v265 = vld [vmem:[#allocation2 + $0x2c] sm:$0xf]
    %v266 = vld [vmem:[#allocation2 + $0x30] sm:$0xf]
    %v267 = vld [vmem:[#allocation2 + $0x34] sm:$0xf]
    %v268 = vld [vmem:[#allocation2 + $0x38] sm:$0xf]
    %v269 = vld [vmem:[#allocation2 + $0x3c] sm:$0xf]
    %v270 = vld [vmem:[%s3] sm:$0x1]
    %v271 = vlaneseq
    %v272 = vshrl.u32 %v271, 7
    %v273 = vsub.s32 0, %v272
    %v274 = vrot.slane %v270, %v273
    %v291 = vunpack.c.l.b16 %v254
    %v292 = vunpack.c.l.b16 %v255
    %v293 = vunpack.c.l.b16 %v256
    %v294 = vunpack.c.l.b16 %v257
    %v295 = vunpack.c.l.b16 %v258
    %v296 = vunpack.c.l.b16 %v259
    %v297 = vunpack.c.l.b16 %v260
    %v298 = vunpack.c.l.b16 %v261
    %v299 = vunpack.c.l.b16 %v262
    %v300 = vunpack.c.l.b16 %v263
    %v301 = vunpack.c.l.b16 %v264
    %v302 = vunpack.c.l.b16 %v265
    %v303 = vunpack.c.l.b16 %v266
    %v304 = vunpack.c.l.b16 %v267
    %v305 = vunpack.c.l.b16 %v268
    %v306 = vunpack.c.l.b16 %v269
    %v307 = vpack.c.b16 %v292, %v291
    %v308 = vpack.c.b16 %v294, %v293
    %v309 = vpack.c.b16 %v296, %v295
    %v310 = vpack.c.b16 %v298, %v297
    %v311 = vpack.c.b16 %v300, %v299
    %v312 = vpack.c.b16 %v302, %v301
    %v313 = vpack.c.b16 %v304, %v303
    %v314 = vpack.c.b16 %v306, %v305
    %323 = vmatprep.subr.bf16.mxu0 0
    %324 = vmatpush1.bf16.msra.mxu0 %v307
    %325 = vmatprep.subr.bf16.mxu0 0
    %326 = vmatpush1.bf16.msra.mxu0 %v308
    %327 = vmatprep.subr.bf16.mxu0 0
    %328 = vmatpush1.bf16.msra.mxu0 %v309
    %329 = vmatprep.subr.bf16.mxu0 0
    %330 = vmatpush1.bf16.msra.mxu0 %v310
    %331 = vmatprep.subr.bf16.mxu0 0
    %332 = vmatpush1.bf16.msra.mxu0 %v311
    %333 = vmatprep.subr.bf16.mxu0 0
    %334 = vmatpush1.bf16.msra.mxu0 %v312
    %335 = vmatprep.subr.bf16.mxu0 0
    %336 = vmatpush1.bf16.msra.mxu0 %v313
    %337 = vmatprep.subr.bf16.mxu0 0
    %338 = vmatpush1.bf16.msra.mxu0 %v314
    %339 = vmatprep.subr.bf16.mxu0 0
    %340 = vmatpush1.bf16.msra.mxu0 0
    %341 = vmatprep.subr.bf16.mxu0 0
    %342 = vmatpush1.bf16.msra.mxu0 0
    %343 = vmatprep.subr.bf16.mxu0 0
    %344 = vmatpush1.bf16.msra.mxu0 0
    %345 = vmatprep.subr.bf16.mxu0 0
    %346 = vmatpush1.bf16.msra.mxu0 0
    %347 = vmatprep.subr.bf16.mxu0 0
    %348 = vmatpush1.bf16.msra.mxu0 0
    %349 = vmatprep.subr.bf16.mxu0 0
    %350 = vmatpush1.bf16.msra.mxu0 0
    %351 = vmatprep.subr.bf16.mxu0 0
    %352 = vmatpush1.bf16.msra.mxu0 0
    %353 = vmatprep.subr.bf16.mxu0 0
    %354 = vmatpush1.bf16.msra.mxu0 0
    %355 = vmatprep.mubr.bf16.mxu0 0
    %356 = vmatmul.mubr.bf16.gmra.mrb[0].mxu0 %v253
    %v357 = vpop.f32.mrb[0].mxu0
    %v358 = vadd.f32 %v274, %v357
    %v359 = vpop.f32.mrb[0].mxu0
    %v360 = vpop.f32.mrb[0].mxu0
    %v361 = vadd.f32 %v274, %v360
    %v362 = vpop.f32.mrb[0].mxu0
    %363 = vdwg.mxu0
    %v364 = vmax.f32 %v358, 0.0
    %v365 = vmax.f32 %v361, 0.0
    %v366 = vsel %vm210, 1, 0
    %v367 = vsel %vm211, 1, 0
    %v368 = vsel %vm212, 1, 0
    %v369 = vsel %vm213, 1, 0
    %v370 = vsel %vm214, 1, 0
    %v371 = vsel %vm215, 1, 0
    %v372 = vsel %vm216, 1, 0
    %v373 = vsel %vm217, 1, 0
    %v374 = vsel %vm218, 1, 0
    %v375 = vsel %vm219, 1, 0
    %v376 = vsel %vm220, 1, 0
    %v377 = vsel %vm221, 1, 0
    %v378 = vsel %vm222, 1, 0
    %v379 = vsel %vm223, 1, 0
    %v380 = vsel %vm224, 1, 0
    %v381 = vsel %vm225, 1, 0
    %v382 = vsel %vm226, 1, 0
    %v383 = vsel %vm227, 1, 0
    %v384 = vsel %vm228, 1, 0
    %v385 = vsel %vm229, 1, 0
    %v386 = vsel %vm230, 1, 0
    %v387 = vsel %vm231, 1, 0
    %v388 = vsel %vm232, 1, 0
    %v389 = vsel %vm233, 1, 0
    %v390 = vsel %vm234, 1, 0
    %v391 = vsel %vm235, 1, 0
    %v392 = vsel %vm236, 1, 0
    %v393 = vsel %vm237, 1, 0
    %v394 = vsel %vm238, 1, 0
    %v395 = vsel %vm239, 1, 0
    %v396 = vsel %vm240, 1, 0
    %v397 = vsel %vm241, 1, 0
    %vm398 = vcmp.eq.s32.totalorder %v366, 1
    %vm399 = vcmp.eq.s32.totalorder %v367, 1
    %vm400 = vcmp.eq.s32.totalorder %v368, 1
    %vm401 = vcmp.eq.s32.totalorder %v369, 1
    %vm402 = vcmp.eq.s32.totalorder %v370, 1
    %vm403 = vcmp.eq.s32.totalorder %v371, 1
    %vm404 = vcmp.eq.s32.totalorder %v372, 1
    %vm405 = vcmp.eq.s32.totalorder %v373, 1
    %vm406 = vcmp.eq.s32.totalorder %v374, 1
    %vm407 = vcmp.eq.s32.totalorder %v375, 1
    %vm408 = vcmp.eq.s32.totalorder %v376, 1
    %vm409 = vcmp.eq.s32.totalorder %v377, 1
    %vm410 = vcmp.eq.s32.totalorder %v378, 1
    %vm411 = vcmp.eq.s32.totalorder %v379, 1
    %vm412 = vcmp.eq.s32.totalorder %v380, 1
    %vm413 = vcmp.eq.s32.totalorder %v381, 1
    %vm414 = vcmp.eq.s32.totalorder %v382, 1
    %vm415 = vcmp.eq.s32.totalorder %v383, 1
    %vm416 = vcmp.eq.s32.totalorder %v384, 1
    %vm417 = vcmp.eq.s32.totalorder %v385, 1
    %vm418 = vcmp.eq.s32.totalorder %v386, 1
    %vm419 = vcmp.eq.s32.totalorder %v387, 1
    %vm420 = vcmp.eq.s32.totalorder %v388, 1
    %vm421 = vcmp.eq.s32.totalorder %v389, 1
    %vm422 = vcmp.eq.s32.totalorder %v390, 1
    %vm423 = vcmp.eq.s32.totalorder %v391, 1
    %vm424 = vcmp.eq.s32.totalorder %v392, 1
    %vm425 = vcmp.eq.s32.totalorder %v393, 1
    %vm426 = vcmp.eq.s32.totalorder %v394, 1
    %vm427 = vcmp.eq.s32.totalorder %v395, 1
    %vm428 = vcmp.eq.s32.totalorder %v396, 1
    %vm429 = vcmp.eq.s32.totalorder %v397, 1
    %v430 = vsel %vm398, %v364, -3.4028235e+38
    %v431 = vsel %vm399, %v365, -3.4028235e+38
    %v432 = vsel %vm400, %v364, -3.4028235e+38
    %v433 = vsel %vm401, %v365, -3.4028235e+38
    %v434 = vsel %vm402, %v364, -3.4028235e+38
    %v435 = vsel %vm403, %v365, -3.4028235e+38
    %v436 = vsel %vm404, %v364, -3.4028235e+38
    %v437 = vsel %vm405, %v365, -3.4028235e+38
    %v438 = vsel %vm406, %v364, -3.4028235e+38
    %v439 = vsel %vm407, %v365, -3.4028235e+38
    %v440 = vsel %vm408, %v364, -3.4028235e+38
    %v441 = vsel %vm409, %v365, -3.4028235e+38
    %v442 = vsel %vm410, %v364, -3.4028235e+38
    %v443 = vsel %vm411, %v365, -3.4028235e+38
    %v444 = vsel %vm412, %v364, -3.4028235e+38
    %v445 = vsel %vm413, %v365, -3.4028235e+38
    %v446 = vsel %vm414, %v364, -3.4028235e+38
    %v447 = vsel %vm415, %v365, -3.4028235e+38
    %v448 = vsel %vm416, %v364, -3.4028235e+38
    %v449 = vsel %vm417, %v365, -3.4028235e+38
    %v450 = vsel %vm418, %v364, -3.4028235e+38
    %v451 = vsel %vm419, %v365, -3.4028235e+38
    %v452 = vsel %vm420, %v364, -3.4028235e+38
    %v453 = vsel %vm421, %v365, -3.4028235e+38
    %v454 = vsel %vm422, %v364, -3.4028235e+38
    %v455 = vsel %vm423, %v365, -3.4028235e+38
    %v456 = vsel %vm424, %v364, -3.4028235e+38
    %v457 = vsel %vm425, %v365, -3.4028235e+38
    %v458 = vsel %vm426, %v364, -3.4028235e+38
    %v459 = vsel %vm427, %v365, -3.4028235e+38
    %v460 = vsel %vm428, %v364, -3.4028235e+38
    %v461 = vsel %vm429, %v365, -3.4028235e+38
    %v462 = vmax.f32 %v430, %v431
    %v463 = vrot.slane %v462, 4
    %v464 = vmax.f32 %v462, %v463
    %v465 = vrot.slane %v464, 2
    %v466 = vmax.f32 %v464, %v465
    %v467 = vrot.slane %v466, 1
    %v468 = vmax.f32 %v466, %v467
    %v469 = vmax.f32 %v432, %v433
    %v470 = vrot.slane %v469, 4
    %v471 = vmax.f32 %v469, %v470
    %v472 = vrot.slane %v471, 2
    %v473 = vmax.f32 %v471, %v472
    %v474 = vrot.slane %v473, 1
    %v475 = vmax.f32 %v473, %v474
    %v476 = vmax.f32 %v434, %v435
    %v477 = vrot.slane %v476, 4
    %v478 = vmax.f32 %v476, %v477
    %v479 = vrot.slane %v478, 2
    %v480 = vmax.f32 %v478, %v479
    %v481 = vrot.slane %v480, 1
    %v482 = vmax.f32 %v480, %v481
    %v483 = vmax.f32 %v436, %v437
    %v484 = vrot.slane %v483, 4
    %v485 = vmax.f32 %v483, %v484
    %v486 = vrot.slane %v485, 2
    %v487 = vmax.f32 %v485, %v486
    %v488 = vrot.slane %v487, 1
    %v489 = vmax.f32 %v487, %v488
    %v490 = vmax.f32 %v438, %v439
    %v491 = vrot.slane %v490, 4
    %v492 = vmax.f32 %v490, %v491
    %v493 = vrot.slane %v492, 2
    %v494 = vmax.f32 %v492, %v493
    %v495 = vrot.slane %v494, 1
    %v496 = vmax.f32 %v494, %v495
    %v497 = vmax.f32 %v440, %v441
    %v498 = vrot.slane %v497, 4
    %v499 = vmax.f32 %v497, %v498
    %v500 = vrot.slane %v499, 2
    %v501 = vmax.f32 %v499, %v500
    %v502 = vrot.slane %v501, 1
    %v503 = vmax.f32 %v501, %v502
    %v504 = vmax.f32 %v442, %v443
    %v505 = vrot.slane %v504, 4
    %v506 = vmax.f32 %v504, %v505
    %v507 = vrot.slane %v506, 2
    %v508 = vmax.f32 %v506, %v507
    %v509 = vrot.slane %v508, 1
    %v510 = vmax.f32 %v508, %v509
    %v511 = vmax.f32 %v444, %v445
    %v512 = vrot.slane %v511, 4
    %v513 = vmax.f32 %v511, %v512
    %v514 = vrot.slane %v513, 2
    %v515 = vmax.f32 %v513, %v514
    %v516 = vrot.slane %v515, 1
    %v517 = vmax.f32 %v515, %v516
    %v518 = vmax.f32 %v446, %v447
    %v519 = vrot.slane %v518, 4
    %v520 = vmax.f32 %v518, %v519
    %v521 = vrot.slane %v520, 2
    %v522 = vmax.f32 %v520, %v521
    %v523 = vrot.slane %v522, 1
    %v524 = vmax.f32 %v522, %v523
    %v525 = vmax.f32 %v448, %v449
    %v526 = vrot.slane %v525, 4
    %v527 = vmax.f32 %v525, %v526
    %v528 = vrot.slane %v527, 2
    %v529 = vmax.f32 %v527, %v528
    %v530 = vrot.slane %v529, 1
    %v531 = vmax.f32 %v529, %v530
    %v532 = vmax.f32 %v450, %v451
    %v533 = vrot.slane %v532, 4
    %v534 = vmax.f32 %v532, %v533
    %v535 = vrot.slane %v534, 2
    %v536 = vmax.f32 %v534, %v535
    %v537 = vrot.slane %v536, 1
    %v538 = vmax.f32 %v536, %v537
    %v539 = vmax.f32 %v452, %v453
    %v540 = vrot.slane %v539, 4
    %v541 = vmax.f32 %v539, %v540
    %v542 = vrot.slane %v541, 2
    %v543 = vmax.f32 %v541, %v542
    %v544 = vrot.slane %v543, 1
    %v545 = vmax.f32 %v543, %v544
    %v546 = vmax.f32 %v454, %v455
    %v547 = vrot.slane %v546, 4
    %v548 = vmax.f32 %v546, %v547
    %v549 = vrot.slane %v548, 2
    %v550 = vmax.f32 %v548, %v549
    %v551 = vrot.slane %v550, 1
    %v552 = vmax.f32 %v550, %v551
    %v553 = vmax.f32 %v456, %v457
    %v554 = vrot.slane %v553, 4
    %v555 = vmax.f32 %v553, %v554
    %v556 = vrot.slane %v555, 2
    %v557 = vmax.f32 %v555, %v556
    %v558 = vrot.slane %v557, 1
    %v559 = vmax.f32 %v557, %v558
    %v560 = vmax.f32 %v458, %v459
    %v561 = vrot.slane %v560, 4
    %v562 = vmax.f32 %v560, %v561
    %v563 = vrot.slane %v562, 2
    %v564 = vmax.f32 %v562, %v563
    %v565 = vrot.slane %v564, 1
    %v566 = vmax.f32 %v564, %v565
    %v567 = vmax.f32 %v460, %v461
    %v568 = vrot.slane %v567, 4
    %v569 = vmax.f32 %v567, %v568
    %v570 = vrot.slane %v569, 2
    %v571 = vmax.f32 %v569, %v570
    %v572 = vrot.slane %v571, 1
    %v573 = vmax.f32 %v571, %v572
    %v574 = vsel %vm249, 1, 0
    %v575 = vsel %vm250, 1, 0
    %vm576 = vcmp.eq.s32.totalorder %v574, 1
    %vm577 = vcmp.eq.s32.totalorder %v575, 1
    %vm594 = vcmask 1041409
    %v595 = vsel %vm594, %v475, %v468
    %vm596 = vcmask 1042434
    %v597 = vsel %vm596, %v482, %v595
    %vm598 = vcmask 1043459
    %v599 = vsel %vm598, %v489, %v597
    %vm600 = vcmask 1044484
    %v601 = vsel %vm600, %v496, %v599
    %vm602 = vcmask 1045509
    %v603 = vsel %vm602, %v503, %v601
    %vm604 = vcmask 1046534
    %v605 = vsel %vm604, %v510, %v603
    %vm606 = vcmask 1047559
    %v607 = vsel %vm606, %v517, %v605
    %v608 = vsel %vm594, %v531, %v524
    %v609 = vsel %vm596, %v538, %v608
    %v610 = vsel %vm598, %v545, %v609
    %v611 = vsel %vm600, %v552, %v610
    %v612 = vsel %vm602, %v559, %v611
    %v613 = vsel %vm604, %v566, %v612
    %v614 = vsel %vm606, %v573, %v613
    %v617 = vsel %vm576, %v607, 0.0
    %v618 = vsel %vm577, %v614, 0.0
    %v619 = vpack.c.bf16 %v618, %v617
    %v620 = vld [vmem:[#allocation2 + $0x40] sm:$0xf]
    %v621 = vld [vmem:[#allocation2 + $0x44] sm:$0xf]
    %v622 = vld [vmem:[#allocation2 + $0x48] sm:$0xf]
    %v623 = vld [vmem:[#allocation2 + $0x4c] sm:$0xf]
    %v624 = vld [vmem:[#allocation2 + $0x50] sm:$0xf]
    %v625 = vld [vmem:[#allocation2 + $0x54] sm:$0xf]
    %v626 = vld [vmem:[#allocation2 + $0x58] sm:$0xf]
    %v627 = vld [vmem:[#allocation2 + $0x5c] sm:$0xf]
    %v628 = vld [vmem:[#allocation2 + $0x60] sm:$0xf]
    %v629 = vld [vmem:[#allocation2 + $0x64] sm:$0xf]
    %v630 = vld [vmem:[#allocation2 + $0x68] sm:$0xf]
    %v631 = vld [vmem:[#allocation2 + $0x6c] sm:$0xf]
    %v632 = vld [vmem:[#allocation2 + $0x70] sm:$0xf]
    %v633 = vld [vmem:[#allocation2 + $0x74] sm:$0xf]
    %v634 = vld [vmem:[#allocation2 + $0x78] sm:$0xf]
    %v635 = vld [vmem:[#allocation2 + $0x7c] sm:$0xf]
    %v636 = vld [vmem:[#allocation2 + $0x80] sm:$0xf]
    %v637 = vld [vmem:[#allocation2 + $0x84] sm:$0xf]
    %v638 = vld [vmem:[#allocation2 + $0x88] sm:$0xf]
    %v639 = vld [vmem:[#allocation2 + $0x8c] sm:$0xf]
    %v640 = vld [vmem:[#allocation2 + $0x90] sm:$0xf]
    %v641 = vld [vmem:[#allocation2 + $0x94] sm:$0xf]
    %v642 = vld [vmem:[#allocation2 + $0x98] sm:$0xf]
    %v643 = vld [vmem:[#allocation2 + $0x9c] sm:$0xf]
    %v644 = vld [vmem:[#allocation2 + $0xa0] sm:$0xf]
    %v645 = vld [vmem:[#allocation2 + $0xa4] sm:$0xf]
    %v646 = vld [vmem:[#allocation2 + $0xa8] sm:$0xf]
    %v647 = vld [vmem:[#allocation2 + $0xac] sm:$0xf]
    %v648 = vld [vmem:[#allocation2 + $0xb0] sm:$0xf]
    %v649 = vld [vmem:[#allocation2 + $0xb4] sm:$0xf]
    %v650 = vld [vmem:[#allocation2 + $0xb8] sm:$0xf]
    %v651 = vld [vmem:[#allocation2 + $0xbc] sm:$0xf]
    %v652 = vld [vmem:[%s3 + $0x1] sm:$0x1]
    %v653 = vlaneseq
    %v654 = vshrl.u32 %v653, 7
    %v655 = vsub.s32 0, %v654
    %v656 = vrot.slane %v652, %v655
    %v689 = vunpack.c.l.b16 %v620
    %v690 = vunpack.c.l.b16 %v621
    %v691 = vunpack.c.l.b16 %v622
    %v692 = vunpack.c.l.b16 %v623
    %v693 = vunpack.c.l.b16 %v624
    %v694 = vunpack.c.l.b16 %v625
    %v695 = vunpack.c.l.b16 %v626
    %v696 = vunpack.c.l.b16 %v627
    %v697 = vunpack.c.l.b16 %v628
    %v698 = vunpack.c.l.b16 %v629
    %v699 = vunpack.c.l.b16 %v630
    %v700 = vunpack.c.l.b16 %v631
    %v701 = vunpack.c.l.b16 %v632
    %v702 = vunpack.c.l.b16 %v633
    %v703 = vunpack.c.l.b16 %v634
    %v704 = vunpack.c.l.b16 %v635
    %v705 = vunpack.c.l.b16 %v636
    %v706 = vunpack.c.l.b16 %v637
    %v707 = vunpack.c.l.b16 %v638
    %v708 = vunpack.c.l.b16 %v639
    %v709 = vunpack.c.l.b16 %v640
    %v710 = vunpack.c.l.b16 %v641
    %v711 = vunpack.c.l.b16 %v642
    %v712 = vunpack.c.l.b16 %v643
    %v713 = vunpack.c.l.b16 %v644
    %v714 = vunpack.c.l.b16 %v645
    %v715 = vunpack.c.l.b16 %v646
    %v716 = vunpack.c.l.b16 %v647
    %v717 = vunpack.c.l.b16 %v648
    %v718 = vunpack.c.l.b16 %v649
    %v719 = vunpack.c.l.b16 %v650
    %v720 = vunpack.c.l.b16 %v651
    %v721 = vpack.c.b16 %v690, %v689
    %v722 = vpack.c.b16 %v692, %v691
    %v723 = vpack.c.b16 %v694, %v693
    %v724 = vpack.c.b16 %v696, %v695
    %v725 = vpack.c.b16 %v698, %v697
    %v726 = vpack.c.b16 %v700, %v699
    %v727 = vpack.c.b16 %v702, %v701
    %v728 = vpack.c.b16 %v704, %v703
    %v729 = vpack.c.b16 %v706, %v705
    %v730 = vpack.c.b16 %v708, %v707
    %v731 = vpack.c.b16 %v710, %v709
    %v732 = vpack.c.b16 %v712, %v711
    %v733 = vpack.c.b16 %v714, %v713
    %v734 = vpack.c.b16 %v716, %v715
    %v735 = vpack.c.b16 %v718, %v717
    %v736 = vpack.c.b16 %v720, %v719
    %753 = vmatprep.subr.bf16.mxu0 0
    %754 = vmatpush1.bf16.msra.mxu0 %v721
    %755 = vmatprep.subr.bf16.mxu0 0
    %756 = vmatpush1.bf16.msra.mxu0 %v722
    %757 = vmatprep.subr.bf16.mxu0 0
    %758 = vmatpush1.bf16.msra.mxu0 %v723
    %759 = vmatprep.subr.bf16.mxu0 0
    %760 = vmatpush1.bf16.msra.mxu0 %v724
    %761 = vmatprep.subr.bf16.mxu0 0
    %762 = vmatpush1.bf16.msra.mxu0 %v725
    %763 = vmatprep.subr.bf16.mxu0 0
    %764 = vmatpush1.bf16.msra.mxu0 %v726
    %765 = vmatprep.subr.bf16.mxu0 0
    %766 = vmatpush1.bf16.msra.mxu0 %v727
    %767 = vmatprep.subr.bf16.mxu0 0
    %768 = vmatpush1.bf16.msra.mxu0 %v728
    %769 = vmatprep.subr.bf16.mxu0 0
    %770 = vmatpush1.bf16.msra.mxu0 %v729
    %771 = vmatprep.subr.bf16.mxu0 0
    %772 = vmatpush1.bf16.msra.mxu0 %v730
    %773 = vmatprep.subr.bf16.mxu0 0
    %774 = vmatpush1.bf16.msra.mxu0 %v731
    %775 = vmatprep.subr.bf16.mxu0 0
    %776 = vmatpush1.bf16.msra.mxu0 %v732
    %777 = vmatprep.subr.bf16.mxu0 0
    %778 = vmatpush1.bf16.msra.mxu0 %v733
    %779 = vmatprep.subr.bf16.mxu0 0
    %780 = vmatpush1.bf16.msra.mxu0 %v734
    %781 = vmatprep.subr.bf16.mxu0 0
    %782 = vmatpush1.bf16.msra.mxu0 %v735
    %783 = vmatprep.subr.bf16.mxu0 0
    %784 = vmatpush1.bf16.msra.mxu0 %v736
    %785 = vmatprep.mubr.bf16.mxu0 %v619
    %786 = vmatmul.mubr.bf16.gmra.mrb[0].mxu0 %v253
    %v787 = vpop.f32.mrb[0].mxu0
    %v788 = vadd.f32 %v656, %v787
    %v789 = vpop.f32.mrb[0].mxu0
    %v790 = vpop.f32.mrb[0].mxu0
    %v791 = vadd.f32 %v656, %v790
    %v792 = vpop.f32.mrb[0].mxu0
    %793 = vdwg.mxu0
    %vm794 = vcmp.gt.f32.partialorder %v788, 0.0
    %vm795 = vcmp.gt.f32.partialorder %v791, 0.0
    %v796 = vmul.f32 %v788, 0.01
    %v797 = vmul.f32 %v791, 0.01
    %v798 = vsel %vm794, %v788, %v796
    %v799 = vsel %vm795, %v791, %v797
    %v800 = vpack.c.bf16 %v799, %v798
    %v801 = vld [vmem:[#allocation2 + $0xc0] sm:$0xf]
    %v802 = vld [vmem:[#allocation2 + $0xc4] sm:$0xf]
    %v803 = vld [vmem:[#allocation2 + $0xc8] sm:$0xf]
    %v804 = vld [vmem:[#allocation2 + $0xcc] sm:$0xf]
    %v805 = vld [vmem:[#allocation2 + $0xd0] sm:$0xf]
    %v806 = vld [vmem:[#allocation2 + $0xd4] sm:$0xf]
    %v807 = vld [vmem:[#allocation2 + $0xd8] sm:$0xf]
    %v808 = vld [vmem:[#allocation2 + $0xdc] sm:$0xf]
    %v809 = vld [vmem:[#allocation2 + $0xe0] sm:$0xf]
    %v810 = vld [vmem:[#allocation2 + $0xe4] sm:$0xf]
    %v811 = vld [vmem:[#allocation2 + $0xe8] sm:$0xf]
    %v812 = vld [vmem:[#allocation2 + $0xec] sm:$0xf]
    %v813 = vld [vmem:[#allocation2 + $0xf0] sm:$0xf]
    %v814 = vld [vmem:[#allocation2 + $0xf4] sm:$0xf]
    %v815 = vld [vmem:[#allocation2 + $0xf8] sm:$0xf]
    %v816 = vld [vmem:[#allocation2 + $0xfc] sm:$0xf]
    %v817 = vld [vmem:[%s3 + $0x2] sm:$0x1]
    %v818 = vlaneseq
    %v819 = vshrl.u32 %v818, 7
    %v820 = vsub.s32 0, %v819
    %v821 = vrot.slane %v817, %v820
    %v838 = vunpack.c.l.b16 %v801
    %v839 = vunpack.c.l.b16 %v802
    %v840 = vunpack.c.l.b16 %v803
    %v841 = vunpack.c.l.b16 %v804
    %v842 = vunpack.c.l.b16 %v805
    %v843 = vunpack.c.l.b16 %v806
    %v844 = vunpack.c.l.b16 %v807
    %v845 = vunpack.c.l.b16 %v808
    %v846 = vunpack.c.l.b16 %v809
    %v847 = vunpack.c.l.b16 %v810
    %v848 = vunpack.c.l.b16 %v811
    %v849 = vunpack.c.l.b16 %v812
    %v850 = vunpack.c.l.b16 %v813
    %v851 = vunpack.c.l.b16 %v814
    %v852 = vunpack.c.l.b16 %v815
    %v853 = vunpack.c.l.b16 %v816
    %v854 = vpack.c.b16 %v839, %v838
    %v855 = vpack.c.b16 %v841, %v840
    %v856 = vpack.c.b16 %v843, %v842
    %v857 = vpack.c.b16 %v845, %v844
    %v858 = vpack.c.b16 %v847, %v846
    %v859 = vpack.c.b16 %v849, %v848
    %v860 = vpack.c.b16 %v851, %v850
    %v861 = vpack.c.b16 %v853, %v852
    %870 = vmatprep.subr.bf16.mxu0 0
    %871 = vmatpush1.bf16.msra.mxu0 %v854
    %872 = vmatprep.subr.bf16.mxu0 0
    %873 = vmatpush1.bf16.msra.mxu0 %v855
    %874 = vmatprep.subr.bf16.mxu0 0
    %875 = vmatpush1.bf16.msra.mxu0 %v856
    %876 = vmatprep.subr.bf16.mxu0 0
    %877 = vmatpush1.bf16.msra.mxu0 %v857
    %878 = vmatprep.subr.bf16.mxu0 0
    %879 = vmatpush1.bf16.msra.mxu0 %v858
    %880 = vmatprep.subr.bf16.mxu0 0
    %881 = vmatpush1.bf16.msra.mxu0 %v859
    %882 = vmatprep.subr.bf16.mxu0 0
    %883 = vmatpush1.bf16.msra.mxu0 %v860
    %884 = vmatprep.subr.bf16.mxu0 0
    %885 = vmatpush1.bf16.msra.mxu0 %v861
    %886 = vmatprep.subr.bf16.mxu0 0
    %887 = vmatpush1.bf16.msra.mxu0 0
    %888 = vmatprep.subr.bf16.mxu0 0
    %889 = vmatpush1.bf16.msra.mxu0 0
    %890 = vmatprep.subr.bf16.mxu0 0
    %891 = vmatpush1.bf16.msra.mxu0 0
    %892 = vmatprep.subr.bf16.mxu0 0
    %893 = vmatpush1.bf16.msra.mxu0 0
    %894 = vmatprep.subr.bf16.mxu0 0
    %895 = vmatpush1.bf16.msra.mxu0 0
    %896 = vmatprep.subr.bf16.mxu0 0
    %897 = vmatpush1.bf16.msra.mxu0 0
    %898 = vmatprep.subr.bf16.mxu0 0
    %899 = vmatpush1.bf16.msra.mxu0 0
    %900 = vmatprep.subr.bf16.mxu0 0
    %901 = vmatpush1.bf16.msra.mxu0 0
    %902 = vmatprep.mubr.bf16.mxu0 0
    %903 = vmatmul.mubr.bf16.gmra.mrb[0].mxu0 %v800
    %v904 = vpop.f32.mrb[0].mxu0
    %v905 = vadd.f32 %v821, %v904
    %v906 = vpop.f32.mrb[0].mxu0
    %v907 = vpop.f32.mrb[0].mxu0
    %v908 = vadd.f32 %v821, %v907
    %v909 = vpop.f32.mrb[0].mxu0
    %910 = vdwg.mxu0
    %v911 = vmax.f32 %v905, 0.0
    %v912 = vmax.f32 %v908, 0.0
    %v913 = vsel %vm398, %v911, -3.4028235e+38
    %v914 = vsel %vm399, %v912, -3.4028235e+38
    %v915 = vsel %vm400, %v911, -3.4028235e+38
    %v916 = vsel %vm401, %v912, -3.4028235e+38
    %v917 = vsel %vm402, %v911, -3.4028235e+38
    %v918 = vsel %vm403, %v912, -3.4028235e+38
    %v919 = vsel %vm404, %v911, -3.4028235e+38
    %v920 = vsel %vm405, %v912, -3.4028235e+38
    %v921 = vsel %vm406, %v911, -3.4028235e+38
    %v922 = vsel %vm407, %v912, -3.4028235e+38
    %v923 = vsel %vm408, %v911, -3.4028235e+38
    %v924 = vsel %vm409, %v912, -3.4028235e+38
    %v925 = vsel %vm410, %v911, -3.4028235e+38
    %v926 = vsel %vm411, %v912, -3.4028235e+38
    %v927 = vsel %vm412, %v911, -3.4028235e+38
    %v928 = vsel %vm413, %v912, -3.4028235e+38
    %v929 = vsel %vm414, %v911, -3.4028235e+38
    %v930 = vsel %vm415, %v912, -3.4028235e+38
    %v931 = vsel %vm416, %v911, -3.4028235e+38
    %v932 = vsel %vm417, %v912, -3.4028235e+38
    %v933 = vsel %vm418, %v911, -3.4028235e+38
    %v934 = vsel %vm419, %v912, -3.4028235e+38
    %v935 = vsel %vm420, %v911, -3.4028235e+38
    %v936 = vsel %vm421, %v912, -3.4028235e+38
    %v937 = vsel %vm422, %v911, -3.4028235e+38
    %v938 = vsel %vm423, %v912, -3.4028235e+38
    %v939 = vsel %vm424, %v911, -3.4028235e+38
    %v940 = vsel %vm425, %v912, -3.4028235e+38
    %v941 = vsel %vm426, %v911, -3.4028235e+38
    %v942 = vsel %vm427, %v912, -3.4028235e+38
    %v943 = vsel %vm428, %v911, -3.4028235e+38
    %v944 = vsel %vm429, %v912, -3.4028235e+38
    %v945 = vmax.f32 %v913, %v914
    %v946 = vrot.slane %v945, 4
    %v947 = vmax.f32 %v945, %v946
    %v948 = vrot.slane %v947, 2
    %v949 = vmax.f32 %v947, %v948
    %v950 = vrot.slane %v949, 1
    %v951 = vmax.f32 %v949, %v950
    %v952 = vmax.f32 %v915, %v916
    %v953 = vrot.slane %v952, 4
    %v954 = vmax.f32 %v952, %v953
    %v955 = vrot.slane %v954, 2
    %v956 = vmax.f32 %v954, %v955
    %v957 = vrot.slane %v956, 1
    %v958 = vmax.f32 %v956, %v957
    %v959 = vmax.f32 %v917, %v918
    %v960 = vrot.slane %v959, 4
    %v961 = vmax.f32 %v959, %v960
    %v962 = vrot.slane %v961, 2
    %v963 = vmax.f32 %v961, %v962
    %v964 = vrot.slane %v963, 1
    %v965 = vmax.f32 %v963, %v964
    %v966 = vmax.f32 %v919, %v920
    %v967 = vrot.slane %v966, 4
    %v968 = vmax.f32 %v966, %v967
    %v969 = vrot.slane %v968, 2
    %v970 = vmax.f32 %v968, %v969
    %v971 = vrot.slane %v970, 1
    %v972 = vmax.f32 %v970, %v971
    %v973 = vmax.f32 %v921, %v922
    %v974 = vrot.slane %v973, 4
    %v975 = vmax.f32 %v973, %v974
    %v976 = vrot.slane %v975, 2
    %v977 = vmax.f32 %v975, %v976
    %v978 = vrot.slane %v977, 1
    %v979 = vmax.f32 %v977, %v978
    %v980 = vmax.f32 %v923, %v924
    %v981 = vrot.slane %v980, 4
    %v982 = vmax.f32 %v980, %v981
    %v983 = vrot.slane %v982, 2
    %v984 = vmax.f32 %v982, %v983
    %v985 = vrot.slane %v984, 1
    %v986 = vmax.f32 %v984, %v985
    %v987 = vmax.f32 %v925, %v926
    %v988 = vrot.slane %v987, 4
    %v989 = vmax.f32 %v987, %v988
    %v990 = vrot.slane %v989, 2
    %v991 = vmax.f32 %v989, %v990
    %v992 = vrot.slane %v991, 1
    %v993 = vmax.f32 %v991, %v992
    %v994 = vmax.f32 %v927, %v928
    %v995 = vrot.slane %v994, 4
    %v996 = vmax.f32 %v994, %v995
    %v997 = vrot.slane %v996, 2
    %v998 = vmax.f32 %v996, %v997
    %v999 = vrot.slane %v998, 1
    %v1000 = vmax.f32 %v998, %v999
    %v1001 = vmax.f32 %v929, %v930
    %v1002 = vrot.slane %v1001, 4
    %v1003 = vmax.f32 %v1001, %v1002
    %v1004 = vrot.slane %v1003, 2
    %v1005 = vmax.f32 %v1003, %v1004
    %v1006 = vrot.slane %v1005, 1
    %v1007 = vmax.f32 %v1005, %v1006
    %v1008 = vmax.f32 %v931, %v932
    %v1009 = vrot.slane %v1008, 4
    %v1010 = vmax.f32 %v1008, %v1009
    %v1011 = vrot.slane %v1010, 2
    %v1012 = vmax.f32 %v1010, %v1011
    %v1013 = vrot.slane %v1012, 1
    %v1014 = vmax.f32 %v1012, %v1013
    %v1015 = vmax.f32 %v933, %v934
    %v1016 = vrot.slane %v1015, 4
    %v1017 = vmax.f32 %v1015, %v1016
    %v1018 = vrot.slane %v1017, 2
    %v1019 = vmax.f32 %v1017, %v1018
    %v1020 = vrot.slane %v1019, 1
    %v1021 = vmax.f32 %v1019, %v1020
    %v1022 = vmax.f32 %v935, %v936
    %v1023 = vrot.slane %v1022, 4
    %v1024 = vmax.f32 %v1022, %v1023
    %v1025 = vrot.slane %v1024, 2
    %v1026 = vmax.f32 %v1024, %v1025
    %v1027 = vrot.slane %v1026, 1
    %v1028 = vmax.f32 %v1026, %v1027
    %v1029 = vmax.f32 %v937, %v938
    %v1030 = vrot.slane %v1029, 4
    %v1031 = vmax.f32 %v1029, %v1030
    %v1032 = vrot.slane %v1031, 2
    %v1033 = vmax.f32 %v1031, %v1032
    %v1034 = vrot.slane %v1033, 1
    %v1035 = vmax.f32 %v1033, %v1034
    %v1036 = vmax.f32 %v939, %v940
    %v1037 = vrot.slane %v1036, 4
    %v1038 = vmax.f32 %v1036, %v1037
    %v1039 = vrot.slane %v1038, 2
    %v1040 = vmax.f32 %v1038, %v1039
    %v1041 = vrot.slane %v1040, 1
    %v1042 = vmax.f32 %v1040, %v1041
    %v1043 = vmax.f32 %v941, %v942
    %v1044 = vrot.slane %v1043, 4
    %v1045 = vmax.f32 %v1043, %v1044
    %v1046 = vrot.slane %v1045, 2
    %v1047 = vmax.f32 %v1045, %v1046
    %v1048 = vrot.slane %v1047, 1
    %v1049 = vmax.f32 %v1047, %v1048
    %v1050 = vmax.f32 %v943, %v944
    %v1051 = vrot.slane %v1050, 4
    %v1052 = vmax.f32 %v1050, %v1051
    %v1053 = vrot.slane %v1052, 2
    %v1054 = vmax.f32 %v1052, %v1053
    %v1055 = vrot.slane %v1054, 1
    %v1056 = vmax.f32 %v1054, %v1055
    %v1073 = vsel %vm594, %v958, %v951
    %v1074 = vsel %vm596, %v965, %v1073
    %v1075 = vsel %vm598, %v972, %v1074
    %v1076 = vsel %vm600, %v979, %v1075
    %v1077 = vsel %vm602, %v986, %v1076
    %v1078 = vsel %vm604, %v993, %v1077
    %v1079 = vsel %vm606, %v1000, %v1078
    %v1080 = vsel %vm594, %v1014, %v1007
    %v1081 = vsel %vm596, %v1021, %v1080
    %v1082 = vsel %vm598, %v1028, %v1081
    %v1083 = vsel %vm600, %v1035, %v1082
    %v1084 = vsel %vm602, %v1042, %v1083
    %v1085 = vsel %vm604, %v1049, %v1084
    %v1086 = vsel %vm606, %v1056, %v1085
    %v1089 = vsel %vm576, %v1079, 0.0
    %v1090 = vsel %vm577, %v1086, 0.0
    %v1091 = vpack.c.bf16 %v1090, %v1089
    %v1092 = vld [vmem:[#allocation2 + $0x100] sm:$0xf]
    %v1093 = vld [vmem:[#allocation2 + $0x104] sm:$0xf]
    %v1094 = vld [vmem:[#allocation2 + $0x108] sm:$0xf]
    %v1095 = vld [vmem:[#allocation2 + $0x10c] sm:$0xf]
    %v1096 = vld [vmem:[#allocation2 + $0x110] sm:$0xf]
    %v1097 = vld [vmem:[#allocation2 + $0x114] sm:$0xf]
    %v1098 = vld [vmem:[#allocation2 + $0x118] sm:$0xf]
    %v1099 = vld [vmem:[#allocation2 + $0x11c] sm:$0xf]
    %v1100 = vld [vmem:[#allocation2 + $0x120] sm:$0xf]
    %v1101 = vld [vmem:[#allocation2 + $0x124] sm:$0xf]
    %v1102 = vld [vmem:[#allocation2 + $0x128] sm:$0xf]
    %v1103 = vld [vmem:[#allocation2 + $0x12c] sm:$0xf]
    %v1104 = vld [vmem:[#allocation2 + $0x130] sm:$0xf]
    %v1105 = vld [vmem:[#allocation2 + $0x134] sm:$0xf]
    %v1106 = vld [vmem:[#allocation2 + $0x138] sm:$0xf]
    %v1107 = vld [vmem:[#allocation2 + $0x13c] sm:$0xf]
    %v1108 = vld [vmem:[#allocation2 + $0x140] sm:$0xf]
    %v1109 = vld [vmem:[#allocation2 + $0x144] sm:$0xf]
    %v1110 = vld [vmem:[#allocation2 + $0x148] sm:$0xf]
    %v1111 = vld [vmem:[#allocation2 + $0x14c] sm:$0xf]
    %v1112 = vld [vmem:[#allocation2 + $0x150] sm:$0xf]
    %v1113 = vld [vmem:[#allocation2 + $0x154] sm:$0xf]
    %v1114 = vld [vmem:[#allocation2 + $0x158] sm:$0xf]
    %v1115 = vld [vmem:[#allocation2 + $0x15c] sm:$0xf]
    %v1116 = vld [vmem:[#allocation2 + $0x160] sm:$0xf]
    %v1117 = vld [vmem:[#allocation2 + $0x164] sm:$0xf]
    %v1118 = vld [vmem:[#allocation2 + $0x168] sm:$0xf]
    %v1119 = vld [vmem:[#allocation2 + $0x16c] sm:$0xf]
    %v1120 = vld [vmem:[#allocation2 + $0x170] sm:$0xf]
    %v1121 = vld [vmem:[#allocation2 + $0x174] sm:$0xf]
    %v1122 = vld [vmem:[#allocation2 + $0x178] sm:$0xf]
    %v1123 = vld [vmem:[#allocation2 + $0x17c] sm:$0xf]
    %v1124 = vld [vmem:[%s3 + $0x3] sm:$0x1]
    %v1125 = vlaneseq
    %v1126 = vshrl.u32 %v1125, 7
    %v1127 = vsub.s32 0, %v1126
    %v1128 = vrot.slane %v1124, %v1127
    %v1161 = vunpack.c.l.b16 %v1092
    %v1162 = vunpack.c.l.b16 %v1093
    %v1163 = vunpack.c.l.b16 %v1094
    %v1164 = vunpack.c.l.b16 %v1095
    %v1165 = vunpack.c.l.b16 %v1096
    %v1166 = vunpack.c.l.b16 %v1097
    %v1167 = vunpack.c.l.b16 %v1098
    %v1168 = vunpack.c.l.b16 %v1099
    %v1169 = vunpack.c.l.b16 %v1100
    %v1170 = vunpack.c.l.b16 %v1101
    %v1171 = vunpack.c.l.b16 %v1102
    %v1172 = vunpack.c.l.b16 %v1103
    %v1173 = vunpack.c.l.b16 %v1104
    %v1174 = vunpack.c.l.b16 %v1105
    %v1175 = vunpack.c.l.b16 %v1106
    %v1176 = vunpack.c.l.b16 %v1107
    %v1177 = vunpack.c.l.b16 %v1108
    %v1178 = vunpack.c.l.b16 %v1109
    %v1179 = vunpack.c.l.b16 %v1110
    %v1180 = vunpack.c.l.b16 %v1111
    %v1181 = vunpack.c.l.b16 %v1112
    %v1182 = vunpack.c.l.b16 %v1113
    %v1183 = vunpack.c.l.b16 %v1114
    %v1184 = vunpack.c.l.b16 %v1115
    %v1185 = vunpack.c.l.b16 %v1116
    %v1186 = vunpack.c.l.b16 %v1117
    %v1187 = vunpack.c.l.b16 %v1118
    %v1188 = vunpack.c.l.b16 %v1119
    %v1189 = vunpack.c.l.b16 %v1120
    %v1190 = vunpack.c.l.b16 %v1121
    %v1191 = vunpack.c.l.b16 %v1122
    %v1192 = vunpack.c.l.b16 %v1123
    %v1193 = vpack.c.b16 %v1162, %v1161
    %v1194 = vpack.c.b16 %v1164, %v1163
    %v1195 = vpack.c.b16 %v1166, %v1165
    %v1196 = vpack.c.b16 %v1168, %v1167
    %v1197 = vpack.c.b16 %v1170, %v1169
    %v1198 = vpack.c.b16 %v1172, %v1171
    %v1199 = vpack.c.b16 %v1174, %v1173
    %v1200 = vpack.c.b16 %v1176, %v1175
    %v1201 = vpack.c.b16 %v1178, %v1177
    %v1202 = vpack.c.b16 %v1180, %v1179
    %v1203 = vpack.c.b16 %v1182, %v1181
    %v1204 = vpack.c.b16 %v1184, %v1183
    %v1205 = vpack.c.b16 %v1186, %v1185
    %v1206 = vpack.c.b16 %v1188, %v1187
    %v1207 = vpack.c.b16 %v1190, %v1189
    %v1208 = vpack.c.b16 %v1192, %v1191
    %1225 = vmatprep.subr.bf16.mxu0 0
    %1226 = vmatpush1.bf16.msra.mxu0 %v1193
    %1227 = vmatprep.subr.bf16.mxu0 0
    %1228 = vmatpush1.bf16.msra.mxu0 %v1194
    %1229 = vmatprep.subr.bf16.mxu0 0
    %1230 = vmatpush1.bf16.msra.mxu0 %v1195
    %1231 = vmatprep.subr.bf16.mxu0 0
    %1232 = vmatpush1.bf16.msra.mxu0 %v1196
    %1233 = vmatprep.subr.bf16.mxu0 0
    %1234 = vmatpush1.bf16.msra.mxu0 %v1197
    %1235 = vmatprep.subr.bf16.mxu0 0
    %1236 = vmatpush1.bf16.msra.mxu0 %v1198
    %1237 = vmatprep.subr.bf16.mxu0 0
    %1238 = vmatpush1.bf16.msra.mxu0 %v1199
    %1239 = vmatprep.subr.bf16.mxu0 0
    %1240 = vmatpush1.bf16.msra.mxu0 %v1200
    %1241 = vmatprep.subr.bf16.mxu0 0
    %1242 = vmatpush1.bf16.msra.mxu0 %v1201
    %1243 = vmatprep.subr.bf16.mxu0 0
    %1244 = vmatpush1.bf16.msra.mxu0 %v1202
    %1245 = vmatprep.subr.bf16.mxu0 0
    %1246 = vmatpush1.bf16.msra.mxu0 %v1203
    %1247 = vmatprep.subr.bf16.mxu0 0
    %1248 = vmatpush1.bf16.msra.mxu0 %v1204
    %1249 = vmatprep.subr.bf16.mxu0 0
    %1250 = vmatpush1.bf16.msra.mxu0 %v1205
    %1251 = vmatprep.subr.bf16.mxu0 0
    %1252 = vmatpush1.bf16.msra.mxu0 %v1206
    %1253 = vmatprep.subr.bf16.mxu0 0
    %1254 = vmatpush1.bf16.msra.mxu0 %v1207
    %1255 = vmatprep.subr.bf16.mxu0 0
    %1256 = vmatpush1.bf16.msra.mxu0 %v1208
    %1257 = vmatprep.mubr.bf16.mxu0 %v1091
    %1258 = vmatmul.mubr.bf16.gmra.mrb[0].mxu0 %v800
    %v1259 = vpop.f32.mrb[0].mxu0
    %v1260 = vadd.f32 %v1128, %v1259
    %v1261 = vpop.f32.mrb[0].mxu0
    %v1262 = vpop.f32.mrb[0].mxu0
    %v1263 = vadd.f32 %v1128, %v1262
    %v1264 = vpop.f32.mrb[0].mxu0
    %1265 = vdwg.mxu0
    %vm1266 = vcmp.gt.f32.partialorder %v1260, 0.0
    %vm1267 = vcmp.gt.f32.partialorder %v1263, 0.0
    %v1268 = vmul.f32 %v1260, 0.01
    %v1269 = vmul.f32 %v1263, 0.01
    %v1270 = vsel %vm1266, %v1260, %v1268
    %v1271 = vsel %vm1267, %v1263, %v1269
    %v1272 = vpack.c.bf16 %v1271, %v1270
    %v1273 = vld [vmem:[#allocation2 + $0x180] sm:$0xf]
    %v1274 = vld [vmem:[#allocation2 + $0x184] sm:$0xf]
    %v1275 = vld [vmem:[#allocation2 + $0x188] sm:$0xf]
    %v1276 = vld [vmem:[#allocation2 + $0x18c] sm:$0xf]
    %v1277 = vld [vmem:[#allocation2 + $0x190] sm:$0xf]
    %v1278 = vld [vmem:[#allocation2 + $0x194] sm:$0xf]
    %v1279 = vld [vmem:[#allocation2 + $0x198] sm:$0xf]
    %v1280 = vld [vmem:[#allocation2 + $0x19c] sm:$0xf]
    %v1281 = vld [vmem:[#allocation2 + $0x1a0] sm:$0xf]
    %v1282 = vld [vmem:[#allocation2 + $0x1a4] sm:$0xf]
    %v1283 = vld [vmem:[#allocation2 + $0x1a8] sm:$0xf]
    %v1284 = vld [vmem:[#allocation2 + $0x1ac] sm:$0xf]
    %v1285 = vld [vmem:[#allocation2 + $0x1b0] sm:$0xf]
    %v1286 = vld [vmem:[#allocation2 + $0x1b4] sm:$0xf]
    %v1287 = vld [vmem:[#allocation2 + $0x1b8] sm:$0xf]
    %v1288 = vld [vmem:[#allocation2 + $0x1bc] sm:$0xf]
    %v1289 = vld [vmem:[%s3 + $0x4] sm:$0x1]
    %v1290 = vlaneseq
    %v1291 = vshrl.u32 %v1290, 7
    %v1292 = vsub.s32 0, %v1291
    %v1293 = vrot.slane %v1289, %v1292
    %v1310 = vunpack.c.l.b16 %v1273
    %v1311 = vunpack.c.l.b16 %v1274
    %v1312 = vunpack.c.l.b16 %v1275
    %v1313 = vunpack.c.l.b16 %v1276
    %v1314 = vunpack.c.l.b16 %v1277
    %v1315 = vunpack.c.l.b16 %v1278
    %v1316 = vunpack.c.l.b16 %v1279
    %v1317 = vunpack.c.l.b16 %v1280
    %v1318 = vunpack.c.l.b16 %v1281
    %v1319 = vunpack.c.l.b16 %v1282
    %v1320 = vunpack.c.l.b16 %v1283
    %v1321 = vunpack.c.l.b16 %v1284
    %v1322 = vunpack.c.l.b16 %v1285
    %v1323 = vunpack.c.l.b16 %v1286
    %v1324 = vunpack.c.l.b16 %v1287
    %v1325 = vunpack.c.l.b16 %v1288
    %v1326 = vpack.c.b16 %v1311, %v1310
    %v1327 = vpack.c.b16 %v1313, %v1312
    %v1328 = vpack.c.b16 %v1315, %v1314
    %v1329 = vpack.c.b16 %v1317, %v1316
    %v1330 = vpack.c.b16 %v1319, %v1318
    %v1331 = vpack.c.b16 %v1321, %v1320
    %v1332 = vpack.c.b16 %v1323, %v1322
    %v1333 = vpack.c.b16 %v1325, %v1324
    %1342 = vmatprep.subr.bf16.mxu0 0
    %1343 = vmatpush1.bf16.msra.mxu0 %v1326
    %1344 = vmatprep.subr.bf16.mxu0 0
    %1345 = vmatpush1.bf16.msra.mxu0 %v1327
    %1346 = vmatprep.subr.bf16.mxu0 0
    %1347 = vmatpush1.bf16.msra.mxu0 %v1328
    %1348 = vmatprep.subr.bf16.mxu0 0
    %1349 = vmatpush1.bf16.msra.mxu0 %v1329
    %1350 = vmatprep.subr.bf16.mxu0 0
    %1351 = vmatpush1.bf16.msra.mxu0 %v1330
    %1352 = vmatprep.subr.bf16.mxu0 0
    %1353 = vmatpush1.bf16.msra.mxu0 %v1331
    %1354 = vmatprep.subr.bf16.mxu0 0
    %1355 = vmatpush1.bf16.msra.mxu0 %v1332
    %1356 = vmatprep.subr.bf16.mxu0 0
    %1357 = vmatpush1.bf16.msra.mxu0 %v1333
    %1358 = vmatprep.subr.bf16.mxu0 0
    %1359 = vmatpush1.bf16.msra.mxu0 0
    %1360 = vmatprep.subr.bf16.mxu0 0
    %1361 = vmatpush1.bf16.msra.mxu0 0
    %1362 = vmatprep.subr.bf16.mxu0 0
    %1363 = vmatpush1.bf16.msra.mxu0 0
    %1364 = vmatprep.subr.bf16.mxu0 0
    %1365 = vmatpush1.bf16.msra.mxu0 0
    %1366 = vmatprep.subr.bf16.mxu0 0
    %1367 = vmatpush1.bf16.msra.mxu0 0
    %1368 = vmatprep.subr.bf16.mxu0 0
    %1369 = vmatpush1.bf16.msra.mxu0 0
    %1370 = vmatprep.subr.bf16.mxu0 0
    %1371 = vmatpush1.bf16.msra.mxu0 0
    %1372 = vmatprep.subr.bf16.mxu0 0
    %1373 = vmatpush1.bf16.msra.mxu0 0
    %1374 = vmatprep.mubr.bf16.mxu0 0
    %1375 = vmatmul.mubr.bf16.gmra.mrb[0].mxu0 %v1272
    %v1376 = vpop.f32.mrb[0].mxu0
    %v1377 = vadd.f32 %v1293, %v1376
    %v1378 = vpop.f32.mrb[0].mxu0
    %v1379 = vpop.f32.mrb[0].mxu0
    %v1380 = vadd.f32 %v1293, %v1379
    %v1381 = vpop.f32.mrb[0].mxu0
    %1382 = vdwg.mxu0
    %v1383 = vmax.f32 %v1377, 0.0
    %v1384 = vmax.f32 %v1380, 0.0
    %v1385 = vsel %vm398, %v1383, -3.4028235e+38
    %v1386 = vsel %vm399, %v1384, -3.4028235e+38
    %v1387 = vsel %vm400, %v1383, -3.4028235e+38
    %v1388 = vsel %vm401, %v1384, -3.4028235e+38
    %v1389 = vsel %vm402, %v1383, -3.4028235e+38
    %v1390 = vsel %vm403, %v1384, -3.4028235e+38
    %v1391 = vsel %vm404, %v1383, -3.4028235e+38
    %v1392 = vsel %vm405, %v1384, -3.4028235e+38
    %v1393 = vsel %vm406, %v1383, -3.4028235e+38
    %v1394 = vsel %vm407, %v1384, -3.4028235e+38
    %v1395 = vsel %vm408, %v1383, -3.4028235e+38
    %v1396 = vsel %vm409, %v1384, -3.4028235e+38
    %v1397 = vsel %vm410, %v1383, -3.4028235e+38
    %v1398 = vsel %vm411, %v1384, -3.4028235e+38
    %v1399 = vsel %vm412, %v1383, -3.4028235e+38
    %v1400 = vsel %vm413, %v1384, -3.4028235e+38
    %v1401 = vsel %vm414, %v1383, -3.4028235e+38
    %v1402 = vsel %vm415, %v1384, -3.4028235e+38
    %v1403 = vsel %vm416, %v1383, -3.4028235e+38
    %v1404 = vsel %vm417, %v1384, -3.4028235e+38
    %v1405 = vsel %vm418, %v1383, -3.4028235e+38
    %v1406 = vsel %vm419, %v1384, -3.4028235e+38
    %v1407 = vsel %vm420, %v1383, -3.4028235e+38
    %v1408 = vsel %vm421, %v1384, -3.4028235e+38
    %v1409 = vsel %vm422, %v1383, -3.4028235e+38
    %v1410 = vsel %vm423, %v1384, -3.4028235e+38
    %v1411 = vsel %vm424, %v1383, -3.4028235e+38
    %v1412 = vsel %vm425, %v1384, -3.4028235e+38
    %v1413 = vsel %vm426, %v1383, -3.4028235e+38
    %v1414 = vsel %vm427, %v1384, -3.4028235e+38
    %v1415 = vsel %vm428, %v1383, -3.4028235e+38
    %v1416 = vsel %vm429, %v1384, -3.4028235e+38
    %v1417 = vmax.f32 %v1385, %v1386
    %v1418 = vrot.slane %v1417, 4
    %v1419 = vmax.f32 %v1417, %v1418
    %v1420 = vrot.slane %v1419, 2
    %v1421 = vmax.f32 %v1419, %v1420
    %v1422 = vrot.slane %v1421, 1
    %v1423 = vmax.f32 %v1421, %v1422
    %v1424 = vmax.f32 %v1387, %v1388
    %v1425 = vrot.slane %v1424, 4
    %v1426 = vmax.f32 %v1424, %v1425
    %v1427 = vrot.slane %v1426, 2
    %v1428 = vmax.f32 %v1426, %v1427
    %v1429 = vrot.slane %v1428, 1
    %v1430 = vmax.f32 %v1428, %v1429
    %v1431 = vmax.f32 %v1389, %v1390
    %v1432 = vrot.slane %v1431, 4
    %v1433 = vmax.f32 %v1431, %v1432
    %v1434 = vrot.slane %v1433, 2
    %v1435 = vmax.f32 %v1433, %v1434
    %v1436 = vrot.slane %v1435, 1
    %v1437 = vmax.f32 %v1435, %v1436
    %v1438 = vmax.f32 %v1391, %v1392
    %v1439 = vrot.slane %v1438, 4
    %v1440 = vmax.f32 %v1438, %v1439
    %v1441 = vrot.slane %v1440, 2
    %v1442 = vmax.f32 %v1440, %v1441
    %v1443 = vrot.slane %v1442, 1
    %v1444 = vmax.f32 %v1442, %v1443
    %v1445 = vmax.f32 %v1393, %v1394
    %v1446 = vrot.slane %v1445, 4
    %v1447 = vmax.f32 %v1445, %v1446
    %v1448 = vrot.slane %v1447, 2
    %v1449 = vmax.f32 %v1447, %v1448
    %v1450 = vrot.slane %v1449, 1
    %v1451 = vmax.f32 %v1449, %v1450
    %v1452 = vmax.f32 %v1395, %v1396
    %v1453 = vrot.slane %v1452, 4
    %v1454 = vmax.f32 %v1452, %v1453
    %v1455 = vrot.slane %v1454, 2
    %v1456 = vmax.f32 %v1454, %v1455
    %v1457 = vrot.slane %v1456, 1
    %v1458 = vmax.f32 %v1456, %v1457
    %v1459 = vmax.f32 %v1397, %v1398
    %v1460 = vrot.slane %v1459, 4
    %v1461 = vmax.f32 %v1459, %v1460
    %v1462 = vrot.slane %v1461, 2
    %v1463 = vmax.f32 %v1461, %v1462
    %v1464 = vrot.slane %v1463, 1
    %v1465 = vmax.f32 %v1463, %v1464
    %v1466 = vmax.f32 %v1399, %v1400
    %v1467 = vrot.slane %v1466, 4
    %v1468 = vmax.f32 %v1466, %v1467
    %v1469 = vrot.slane %v1468, 2
    %v1470 = vmax.f32 %v1468, %v1469
    %v1471 = vrot.slane %v1470, 1
    %v1472 = vmax.f32 %v1470, %v1471
    %v1473 = vmax.f32 %v1401, %v1402
    %v1474 = vrot.slane %v1473, 4
    %v1475 = vmax.f32 %v1473, %v1474
    %v1476 = vrot.slane %v1475, 2
    %v1477 = vmax.f32 %v1475, %v1476
    %v1478 = vrot.slane %v1477, 1
    %v1479 = vmax.f32 %v1477, %v1478
    %v1480 = vmax.f32 %v1403, %v1404
    %v1481 = vrot.slane %v1480, 4
    %v1482 = vmax.f32 %v1480, %v1481
    %v1483 = vrot.slane %v1482, 2
    %v1484 = vmax.f32 %v1482, %v1483
    %v1485 = vrot.slane %v1484, 1
    %v1486 = vmax.f32 %v1484, %v1485
    %v1487 = vmax.f32 %v1405, %v1406
    %v1488 = vrot.slane %v1487, 4
    %v1489 = vmax.f32 %v1487, %v1488
    %v1490 = vrot.slane %v1489, 2
    %v1491 = vmax.f32 %v1489, %v1490
    %v1492 = vrot.slane %v1491, 1
    %v1493 = vmax.f32 %v1491, %v1492
    %v1494 = vmax.f32 %v1407, %v1408
    %v1495 = vrot.slane %v1494, 4
    %v1496 = vmax.f32 %v1494, %v1495
    %v1497 = vrot.slane %v1496, 2
    %v1498 = vmax.f32 %v1496, %v1497
    %v1499 = vrot.slane %v1498, 1
    %v1500 = vmax.f32 %v1498, %v1499
    %v1501 = vmax.f32 %v1409, %v1410
    %v1502 = vrot.slane %v1501, 4
    %v1503 = vmax.f32 %v1501, %v1502
    %v1504 = vrot.slane %v1503, 2
    %v1505 = vmax.f32 %v1503, %v1504
    %v1506 = vrot.slane %v1505, 1
    %v1507 = vmax.f32 %v1505, %v1506
    %v1508 = vmax.f32 %v1411, %v1412
    %v1509 = vrot.slane %v1508, 4
    %v1510 = vmax.f32 %v1508, %v1509
    %v1511 = vrot.slane %v1510, 2
    %v1512 = vmax.f32 %v1510, %v1511
    %v1513 = vrot.slane %v1512, 1
    %v1514 = vmax.f32 %v1512, %v1513
    %v1515 = vmax.f32 %v1413, %v1414
    %v1516 = vrot.slane %v1515, 4
    %v1517 = vmax.f32 %v1515, %v1516
    %v1518 = vrot.slane %v1517, 2
    %v1519 = vmax.f32 %v1517, %v1518
    %v1520 = vrot.slane %v1519, 1
    %v1521 = vmax.f32 %v1519, %v1520
    %v1522 = vmax.f32 %v1415, %v1416
    %v1523 = vrot.slane %v1522, 4
    %v1524 = vmax.f32 %v1522, %v1523
    %v1525 = vrot.slane %v1524, 2
    %v1526 = vmax.f32 %v1524, %v1525
    %v1527 = vrot.slane %v1526, 1
    %v1528 = vmax.f32 %v1526, %v1527
    %v1545 = vsel %vm594, %v1430, %v1423
    %v1546 = vsel %vm596, %v1437, %v1545
    %v1547 = vsel %vm598, %v1444, %v1546
    %v1548 = vsel %vm600, %v1451, %v1547
    %v1549 = vsel %vm602, %v1458, %v1548
    %v1550 = vsel %vm604, %v1465, %v1549
    %v1551 = vsel %vm606, %v1472, %v1550
    %v1552 = vsel %vm594, %v1486, %v1479
    %v1553 = vsel %vm596, %v1493, %v1552
    %v1554 = vsel %vm598, %v1500, %v1553
    %v1555 = vsel %vm600, %v1507, %v1554
    %v1556 = vsel %vm602, %v1514, %v1555
    %v1557 = vsel %vm604, %v1521, %v1556
    %v1558 = vsel %vm606, %v1528, %v1557
    %v1561 = vsel %vm576, %v1551, 0.0
    %v1562 = vsel %vm577, %v1558, 0.0
    %v1563 = vpack.c.bf16 %v1562, %v1561
    %v1564 = vld [vmem:[#allocation2 + $0x1c0] sm:$0xf]
    %v1565 = vld [vmem:[#allocation2 + $0x1c4] sm:$0xf]
    %v1566 = vld [vmem:[#allocation2 + $0x1c8] sm:$0xf]
    %v1567 = vld [vmem:[#allocation2 + $0x1cc] sm:$0xf]
    %v1568 = vld [vmem:[#allocation2 + $0x1d0] sm:$0xf]
    %v1569 = vld [vmem:[#allocation2 + $0x1d4] sm:$0xf]
    %v1570 = vld [vmem:[#allocation2 + $0x1d8] sm:$0xf]
    %v1571 = vld [vmem:[#allocation2 + $0x1dc] sm:$0xf]
    %v1572 = vld [vmem:[#allocation2 + $0x1e0] sm:$0xf]
    %v1573 = vld [vmem:[#allocation2 + $0x1e4] sm:$0xf]
    %v1574 = vld [vmem:[#allocation2 + $0x1e8] sm:$0xf]
    %v1575 = vld [vmem:[#allocation2 + $0x1ec] sm:$0xf]
    %v1576 = vld [vmem:[#allocation2 + $0x1f0] sm:$0xf]
    %v1577 = vld [vmem:[#allocation2 + $0x1f4] sm:$0xf]
    %v1578 = vld [vmem:[#allocation2 + $0x1f8] sm:$0xf]
    %v1579 = vld [vmem:[#allocation2 + $0x1fc] sm:$0xf]
    %v1580 = vld [vmem:[#allocation2 + $0x200] sm:$0xf]
    %v1581 = vld [vmem:[#allocation2 + $0x204] sm:$0xf]
    %v1582 = vld [vmem:[#allocation2 + $0x208] sm:$0xf]
    %v1583 = vld [vmem:[#allocation2 + $0x20c] sm:$0xf]
    %v1584 = vld [vmem:[#allocation2 + $0x210] sm:$0xf]
    %v1585 = vld [vmem:[#allocation2 + $0x214] sm:$0xf]
    %v1586 = vld [vmem:[#allocation2 + $0x218] sm:$0xf]
    %v1587 = vld [vmem:[#allocation2 + $0x21c] sm:$0xf]
    %v1588 = vld [vmem:[#allocation2 + $0x220] sm:$0xf]
    %v1589 = vld [vmem:[#allocation2 + $0x224] sm:$0xf]
    %v1590 = vld [vmem:[#allocation2 + $0x228] sm:$0xf]
    %v1591 = vld [vmem:[#allocation2 + $0x22c] sm:$0xf]
    %v1592 = vld [vmem:[#allocation2 + $0x230] sm:$0xf]
    %v1593 = vld [vmem:[#allocation2 + $0x234] sm:$0xf]
    %v1594 = vld [vmem:[#allocation2 + $0x238] sm:$0xf]
    %v1595 = vld [vmem:[#allocation2 + $0x23c] sm:$0xf]
    %v1596 = vld [vmem:[%s3 + $0x5] sm:$0x1]
    %v1597 = vlaneseq
    %v1598 = vshrl.u32 %v1597, 7
    %v1599 = vsub.s32 0, %v1598
    %v1600 = vrot.slane %v1596, %v1599
    %v1633 = vunpack.c.l.b16 %v1564
    %v1634 = vunpack.c.l.b16 %v1565
    %v1635 = vunpack.c.l.b16 %v1566
    %v1636 = vunpack.c.l.b16 %v1567
    %v1637 = vunpack.c.l.b16 %v1568
    %v1638 = vunpack.c.l.b16 %v1569
    %v1639 = vunpack.c.l.b16 %v1570
    %v1640 = vunpack.c.l.b16 %v1571
    %v1641 = vunpack.c.l.b16 %v1572
    %v1642 = vunpack.c.l.b16 %v1573
    %v1643 = vunpack.c.l.b16 %v1574
    %v1644 = vunpack.c.l.b16 %v1575
    %v1645 = vunpack.c.l.b16 %v1576
    %v1646 = vunpack.c.l.b16 %v1577
    %v1647 = vunpack.c.l.b16 %v1578
    %v1648 = vunpack.c.l.b16 %v1579
    %v1649 = vunpack.c.l.b16 %v1580
    %v1650 = vunpack.c.l.b16 %v1581
    %v1651 = vunpack.c.l.b16 %v1582
    %v1652 = vunpack.c.l.b16 %v1583
    %v1653 = vunpack.c.l.b16 %v1584
    %v1654 = vunpack.c.l.b16 %v1585
    %v1655 = vunpack.c.l.b16 %v1586
    %v1656 = vunpack.c.l.b16 %v1587
    %v1657 = vunpack.c.l.b16 %v1588
    %v1658 = vunpack.c.l.b16 %v1589
    %v1659 = vunpack.c.l.b16 %v1590
    %v1660 = vunpack.c.l.b16 %v1591
    %v1661 = vunpack.c.l.b16 %v1592
    %v1662 = vunpack.c.l.b16 %v1593
    %v1663 = vunpack.c.l.b16 %v1594
    %v1664 = vunpack.c.l.b16 %v1595
    %v1665 = vpack.c.b16 %v1634, %v1633
    %v1666 = vpack.c.b16 %v1636, %v1635
    %v1667 = vpack.c.b16 %v1638, %v1637
    %v1668 = vpack.c.b16 %v1640, %v1639
    %v1669 = vpack.c.b16 %v1642, %v1641
    %v1670 = vpack.c.b16 %v1644, %v1643
    %v1671 = vpack.c.b16 %v1646, %v1645
    %v1672 = vpack.c.b16 %v1648, %v1647
    %v1673 = vpack.c.b16 %v1650, %v1649
    %v1674 = vpack.c.b16 %v1652, %v1651
    %v1675 = vpack.c.b16 %v1654, %v1653
    %v1676 = vpack.c.b16 %v1656, %v1655
    %v1677 = vpack.c.b16 %v1658, %v1657
    %v1678 = vpack.c.b16 %v1660, %v1659
    %v1679 = vpack.c.b16 %v1662, %v1661
    %v1680 = vpack.c.b16 %v1664, %v1663
    %1697 = vmatprep.subr.bf16.mxu0 0
    %1698 = vmatpush1.bf16.msra.mxu0 %v1665
    %1699 = vmatprep.subr.bf16.mxu0 0
    %1700 = vmatpush1.bf16.msra.mxu0 %v1666
    %1701 = vmatprep.subr.bf16.mxu0 0
    %1702 = vmatpush1.bf16.msra.mxu0 %v1667
    %1703 = vmatprep.subr.bf16.mxu0 0
    %1704 = vmatpush1.bf16.msra.mxu0 %v1668
    %1705 = vmatprep.subr.bf16.mxu0 0
    %1706 = vmatpush1.bf16.msra.mxu0 %v1669
    %1707 = vmatprep.subr.bf16.mxu0 0
    %1708 = vmatpush1.bf16.msra.mxu0 %v1670
    %1709 = vmatprep.subr.bf16.mxu0 0
    %1710 = vmatpush1.bf16.msra.mxu0 %v1671
    %1711 = vmatprep.subr.bf16.mxu0 0
    %1712 = vmatpush1.bf16.msra.mxu0 %v1672
    %1713 = vmatprep.subr.bf16.mxu0 0
    %1714 = vmatpush1.bf16.msra.mxu0 %v1673
    %1715 = vmatprep.subr.bf16.mxu0 0
    %1716 = vmatpush1.bf16.msra.mxu0 %v1674
    %1717 = vmatprep.subr.bf16.mxu0 0
    %1718 = vmatpush1.bf16.msra.mxu0 %v1675
    %1719 = vmatprep.subr.bf16.mxu0 0
    %1720 = vmatpush1.bf16.msra.mxu0 %v1676
    %1721 = vmatprep.subr.bf16.mxu0 0
    %1722 = vmatpush1.bf16.msra.mxu0 %v1677
    %1723 = vmatprep.subr.bf16.mxu0 0
    %1724 = vmatpush1.bf16.msra.mxu0 %v1678
    %1725 = vmatprep.subr.bf16.mxu0 0
    %1726 = vmatpush1.bf16.msra.mxu0 %v1679
    %1727 = vmatprep.subr.bf16.mxu0 0
    %1728 = vmatpush1.bf16.msra.mxu0 %v1680
    %1729 = vmatprep.mubr.bf16.mxu0 %v1563
    %1730 = vmatmul.mubr.bf16.gmra.mrb[0].mxu0 %v1272
    %v1731 = vpop.f32.mrb[0].mxu0
    %v1732 = vadd.f32 %v1600, %v1731
    %v1733 = vpop.f32.mrb[0].mxu0
    %v1734 = vpop.f32.mrb[0].mxu0
    %v1735 = vadd.f32 %v1600, %v1734
    %v1736 = vpop.f32.mrb[0].mxu0
    %1737 = vdwg.mxu0
    %vm1738 = vcmp.gt.f32.partialorder %v1732, 0.0
    %vm1739 = vcmp.gt.f32.partialorder %v1735, 0.0
    %v1740 = vmul.f32 %v1732, 0.01
    %v1741 = vmul.f32 %v1735, 0.01
    %v1742 = vsel %vm1738, %v1732, %v1740
    %v1743 = vsel %vm1739, %v1735, %v1741
    %v1744 = vpack.c.bf16 %v1743, %v1742
    %v1745 = vld [vmem:[#allocation2 + $0x240] sm:$0xf]
    %v1746 = vld [vmem:[#allocation2 + $0x244] sm:$0xf]
    %v1747 = vld [vmem:[#allocation2 + $0x248] sm:$0xf]
    %v1748 = vld [vmem:[#allocation2 + $0x24c] sm:$0xf]
    %v1749 = vld [vmem:[#allocation2 + $0x250] sm:$0xf]
    %v1750 = vld [vmem:[#allocation2 + $0x254] sm:$0xf]
    %v1751 = vld [vmem:[#allocation2 + $0x258] sm:$0xf]
    %v1752 = vld [vmem:[#allocation2 + $0x25c] sm:$0xf]
    %v1753 = vld [vmem:[#allocation2 + $0x260] sm:$0xf]
    %v1754 = vld [vmem:[#allocation2 + $0x264] sm:$0xf]
    %v1755 = vld [vmem:[#allocation2 + $0x268] sm:$0xf]
    %v1756 = vld [vmem:[#allocation2 + $0x26c] sm:$0xf]
    %v1757 = vld [vmem:[#allocation2 + $0x270] sm:$0xf]
    %v1758 = vld [vmem:[#allocation2 + $0x274] sm:$0xf]
    %v1759 = vld [vmem:[#allocation2 + $0x278] sm:$0xf]
    %v1760 = vld [vmem:[#allocation2 + $0x27c] sm:$0xf]
    %v1761 = vld [vmem:[%s3 + $0x6] sm:$0x1]
    %v1762 = vlaneseq
    %v1763 = vshrl.u32 %v1762, 7
    %v1764 = vsub.s32 0, %v1763
    %v1765 = vrot.slane %v1761, %v1764
    %v1782 = vunpack.c.l.b16 %v1745
    %v1783 = vunpack.c.l.b16 %v1746
    %v1784 = vunpack.c.l.b16 %v1747
    %v1785 = vunpack.c.l.b16 %v1748
    %v1786 = vunpack.c.l.b16 %v1749
    %v1787 = vunpack.c.l.b16 %v1750
    %v1788 = vunpack.c.l.b16 %v1751
    %v1789 = vunpack.c.l.b16 %v1752
    %v1790 = vunpack.c.l.b16 %v1753
    %v1791 = vunpack.c.l.b16 %v1754
    %v1792 = vunpack.c.l.b16 %v1755
    %v1793 = vunpack.c.l.b16 %v1756
    %v1794 = vunpack.c.l.b16 %v1757
    %v1795 = vunpack.c.l.b16 %v1758
    %v1796 = vunpack.c.l.b16 %v1759
    %v1797 = vunpack.c.l.b16 %v1760
    %v1798 = vpack.c.b16 %v1783, %v1782
    %v1799 = vpack.c.b16 %v1785, %v1784
    %v1800 = vpack.c.b16 %v1787, %v1786
    %v1801 = vpack.c.b16 %v1789, %v1788
    %v1802 = vpack.c.b16 %v1791, %v1790
    %v1803 = vpack.c.b16 %v1793, %v1792
    %v1804 = vpack.c.b16 %v1795, %v1794
    %v1805 = vpack.c.b16 %v1797, %v1796
    %1814 = vmatprep.subr.bf16.mxu0 0
    %1815 = vmatpush1.bf16.msra.mxu0 %v1798
    %1816 = vmatprep.subr.bf16.mxu0 0
    %1817 = vmatpush1.bf16.msra.mxu0 %v1799
    %1818 = vmatprep.subr.bf16.mxu0 0
    %1819 = vmatpush1.bf16.msra.mxu0 %v1800
    %1820 = vmatprep.subr.bf16.mxu0 0
    %1821 = vmatpush1.bf16.msra.mxu0 %v1801
    %1822 = vmatprep.subr.bf16.mxu0 0
    %1823 = vmatpush1.bf16.msra.mxu0 %v1802
    %1824 = vmatprep.subr.bf16.mxu0 0
    %1825 = vmatpush1.bf16.msra.mxu0 %v1803
    %1826 = vmatprep.subr.bf16.mxu0 0
    %1827 = vmatpush1.bf16.msra.mxu0 %v1804
    %1828 = vmatprep.subr.bf16.mxu0 0
    %1829 = vmatpush1.bf16.msra.mxu0 %v1805
    %1830 = vmatprep.subr.bf16.mxu0 0
    %1831 = vmatpush1.bf16.msra.mxu0 0
    %1832 = vmatprep.subr.bf16.mxu0 0
    %1833 = vmatpush1.bf16.msra.mxu0 0
    %1834 = vmatprep.subr.bf16.mxu0 0
    %1835 = vmatpush1.bf16.msra.mxu0 0
    %1836 = vmatprep.subr.bf16.mxu0 0
    %1837 = vmatpush1.bf16.msra.mxu0 0
    %1838 = vmatprep.subr.bf16.mxu0 0
    %1839 = vmatpush1.bf16.msra.mxu0 0
    %1840 = vmatprep.subr.bf16.mxu0 0
    %1841 = vmatpush1.bf16.msra.mxu0 0
    %1842 = vmatprep.subr.bf16.mxu0 0
    %1843 = vmatpush1.bf16.msra.mxu0 0
    %1844 = vmatprep.subr.bf16.mxu0 0
    %1845 = vmatpush1.bf16.msra.mxu0 0
    %1846 = vmatprep.mubr.bf16.mxu0 0
    %1847 = vmatmul.mubr.bf16.gmra.mrb[0].mxu0 %v1744
    %v1848 = vpop.f32.mrb[0].mxu0
    %v1849 = vadd.f32 %v1765, %v1848
    %v1850 = vpop.f32.mrb[0].mxu0
    %v1851 = vpop.f32.mrb[0].mxu0
    %v1852 = vadd.f32 %v1765, %v1851
    %v1853 = vpop.f32.mrb[0].mxu0
    %1854 = vdwg.mxu0
    %vm1855 = vcmp.gt.f32.partialorder %v1849, 0.0
    %vm1856 = vcmp.gt.f32.partialorder %v1852, 0.0
    %v1857 = vmul.f32 %v1849, 0.01
    %v1858 = vmul.f32 %v1852, 0.01
    %v1859 = vsel %vm1855, %v1849, %v1857
    %v1860 = vsel %vm1856, %v1852, %v1858
    %v1861 = vpack.c.bf16 %v1860, %v1859
    %v1862 = vld [vmem:[#allocation2 + $0x280] sm:$0xf]
    %v1863 = vld [vmem:[#allocation2 + $0x284] sm:$0xf]
    %v1864 = vld [vmem:[#allocation2 + $0x288] sm:$0xf]
    %v1865 = vld [vmem:[#allocation2 + $0x28c] sm:$0xf]
    %v1866 = vld [vmem:[#allocation2 + $0x290] sm:$0xf]
    %v1867 = vld [vmem:[#allocation2 + $0x294] sm:$0xf]
    %v1868 = vld [vmem:[#allocation2 + $0x298] sm:$0xf]
    %v1869 = vld [vmem:[#allocation2 + $0x29c] sm:$0xf]
    %v1870 = vld [vmem:[#allocation2 + $0x2a0] sm:$0xf]
    %v1871 = vld [vmem:[#allocation2 + $0x2a4] sm:$0xf]
    %v1872 = vld [vmem:[#allocation2 + $0x2a8] sm:$0xf]
    %v1873 = vld [vmem:[#allocation2 + $0x2ac] sm:$0xf]
    %v1874 = vld [vmem:[#allocation2 + $0x2b0] sm:$0xf]
    %v1875 = vld [vmem:[#allocation2 + $0x2b4] sm:$0xf]
    %v1876 = vld [vmem:[#allocation2 + $0x2b8] sm:$0xf]
    %v1877 = vld [vmem:[#allocation2 + $0x2bc] sm:$0xf]
    %v1878 = vld [vmem:[%s3 + $0x7] sm:$0x1]
    %v1879 = vlaneseq
    %v1880 = vshrl.u32 %v1879, 7
    %v1881 = vsub.s32 0, %v1880
    %v1882 = vrot.slane %v1878, %v1881
    %v1899 = vunpack.c.l.b16 %v1862
    %v1900 = vunpack.c.l.b16 %v1863
    %v1901 = vunpack.c.l.b16 %v1864
    %v1902 = vunpack.c.l.b16 %v1865
    %v1903 = vunpack.c.l.b16 %v1866
    %v1904 = vunpack.c.l.b16 %v1867
    %v1905 = vunpack.c.l.b16 %v1868
    %v1906 = vunpack.c.l.b16 %v1869
    %v1907 = vunpack.c.l.b16 %v1870
    %v1908 = vunpack.c.l.b16 %v1871
    %v1909 = vunpack.c.l.b16 %v1872
    %v1910 = vunpack.c.l.b16 %v1873
    %v1911 = vunpack.c.l.b16 %v1874
    %v1912 = vunpack.c.l.b16 %v1875
    %v1913 = vunpack.c.l.b16 %v1876
    %v1914 = vunpack.c.l.b16 %v1877
    %v1915 = vpack.c.b16 %v1900, %v1899
    %v1916 = vpack.c.b16 %v1902, %v1901
    %v1917 = vpack.c.b16 %v1904, %v1903
    %v1918 = vpack.c.b16 %v1906, %v1905
    %v1919 = vpack.c.b16 %v1908, %v1907
    %v1920 = vpack.c.b16 %v1910, %v1909
    %v1921 = vpack.c.b16 %v1912, %v1911
    %v1922 = vpack.c.b16 %v1914, %v1913
    %1931 = vmatprep.subr.bf16.mxu0 0
    %1932 = vmatpush1.bf16.msra.mxu0 %v1915
    %1933 = vmatprep.subr.bf16.mxu0 0
    %1934 = vmatpush1.bf16.msra.mxu0 %v1916
    %1935 = vmatprep.subr.bf16.mxu0 0
    %1936 = vmatpush1.bf16.msra.mxu0 %v1917
    %1937 = vmatprep.subr.bf16.mxu0 0
    %1938 = vmatpush1.bf16.msra.mxu0 %v1918
    %1939 = vmatprep.subr.bf16.mxu0 0
    %1940 = vmatpush1.bf16.msra.mxu0 %v1919
    %1941 = vmatprep.subr.bf16.mxu0 0
    %1942 = vmatpush1.bf16.msra.mxu0 %v1920
    %1943 = vmatprep.subr.bf16.mxu0 0
    %1944 = vmatpush1.bf16.msra.mxu0 %v1921
    %1945 = vmatprep.subr.bf16.mxu0 0
    %1946 = vmatpush1.bf16.msra.mxu0 %v1922
    %1947 = vmatprep.subr.bf16.mxu0 0
    %1948 = vmatpush1.bf16.msra.mxu0 0
    %1949 = vmatprep.subr.bf16.mxu0 0
    %1950 = vmatpush1.bf16.msra.mxu0 0
    %1951 = vmatprep.subr.bf16.mxu0 0
    %1952 = vmatpush1.bf16.msra.mxu0 0
    %1953 = vmatprep.subr.bf16.mxu0 0
    %1954 = vmatpush1.bf16.msra.mxu0 0
    %1955 = vmatprep.subr.bf16.mxu0 0
    %1956 = vmatpush1.bf16.msra.mxu0 0
    %1957 = vmatprep.subr.bf16.mxu0 0
    %1958 = vmatpush1.bf16.msra.mxu0 0
    %1959 = vmatprep.subr.bf16.mxu0 0
    %1960 = vmatpush1.bf16.msra.mxu0 0
    %1961 = vmatprep.subr.bf16.mxu0 0
    %1962 = vmatpush1.bf16.msra.mxu0 0
    %1963 = vmatprep.mubr.bf16.mxu0 0
    %1964 = vmatmul.mubr.bf16.gmra.mrb[0].mxu0 %v1861
    %v1965 = vpop.f32.mrb[0].mxu0
    %v1966 = vadd.f32 %v1882, %v1965
    %v1967 = vpop.f32.mrb[0].mxu0
    %v1968 = vpop.f32.mrb[0].mxu0
    %v1969 = vadd.f32 %v1882, %v1968
    %v1970 = vpop.f32.mrb[0].mxu0
    %1971 = vdwg.mxu0
    %v1972 = vsub.f32 0.0, %v1966
    %v1973 = vsub.f32 0.0, %v1969
    %v1974 = vmul.f32 %v1972, 1.442695
    %v1975 = vpow.pop %v1974
    %v1976 = vmul.f32 %v1973, 1.442695
    %v1977 = vpow.pop %v1976
    %v1978 = vadd.f32 %v1975, 1.0
    %v1979 = vadd.f32 %v1977, 1.0
    %v1980 = vrcp.pop %v1978
    %v1981 = vrcp.pop %v1979
    %1982 = vst [vmem:[%s4] sm:$0xff] %v1980
    %1983 = vst [vmem:[%s4 + $0x8] sm:$0xff] %v1981
    // Predicated region
    $region22: #{_forward.1} parent=1 // pred_check
      _
    $region23: #{_forward.1} parent=1 // pred_check_branch
      %1985 = sbr.rel (0) target = $region25
    $region24: #{_forward.1} parent=1 // pred_region
      _
    $region25: #{_forward.1} parent=1 // pred_fallthru
      _
    // Predicated region
    $region26: #{_forward.1} parent=1 // pred_check
      _
    $region27: #{_forward.1} parent=1 // pred_check_branch
      %1987 = sbr.rel (0) target = $region29
    $region28: #{_forward.1} parent=1 // pred_region
      _
    $region29: #{_forward.1} parent=1 // pred_fallthru
      _
    %1988 = vsyncpa [#allocation3], 1

</llo_original>
